<compile_context>
chip_gen: v6e
topology: v6e:2x2x1
jax: 0.10.0
libtpu: 0.0.40
codegen_flags: <defaults>
</compile_context>

<pallas_src>
from functools import partial

import jax
import jax.numpy as jnp
from jax import lax
from jax.experimental import pallas as pl
from jax.experimental.pallas import tpu as pltpu


# ----------------------------- fused kernel -------------------------------- #

def fused_attn_kernel(x_ref, wq_ref, wk_ref, wv_ref, wproj_ref, bproj_ref,
                      pm_ref, pv_ref, maskv_ref, seg_ref, expand_ref, o_ref,
                      *, num_heads, head_dim, seq_len, batch_block, scale):
    """One grid step: `batch_block` batch elements, rows flattened to (R, C)."""
    H, D, N, bb = num_heads, head_dim, seq_len, batch_block
    R, C = x_ref.shape                                   # R = bb * N

    x = x_ref[...]                                       # (R, C)

    # q / k / v projections (no bias); weights resident in VMEM.
    q = jnp.dot(x, wq_ref[...], preferred_element_type=jnp.float32)   # (R, C)
    k = jnp.dot(x, wk_ref[...], preferred_element_type=jnp.float32)
    v = jnp.dot(x, wv_ref[...], preferred_element_type=jnp.float32)

    # Lane-dense per-head standardization via resident block-diagonal
    # averaging matrices (pm: 1/D, pv: 1/(D-1) -> unbiased, torch.std).
    # No epsilon, matching torch semantics (constant rows -> Inf/NaN there too).
    pm = pm_ref[...]
    pv = pv_ref[...]
    qc = q - jnp.dot(q, pm, preferred_element_type=jnp.float32)
    q_var = jnp.dot(qc * qc, pv, preferred_element_type=jnp.float32)
    qn = qc * (lax.rsqrt(q_var) * scale)                 # softmax scale folded in
    kc = k - jnp.dot(k, pm, preferred_element_type=jnp.float32)
    k_var = jnp.dot(kc * kc, pv, preferred_element_type=jnp.float32)
    kn = kc * lax.rsqrt(k_var)

    mask_v = maskv_ref[...]                              # (H*N, C): row h*N+j keeps head-h cols
    seg = seg_ref[...]                                   # (H*N, H): per-head column sums
    expand = expand_ref[...]                             # (H, C):  broadcast r over head cols

    outs = []
    for b in range(bb):                                  # static, bb in {1, B}
        rs = slice(b * N, (b + 1) * N)
        qn_b, kn_b, v_b = qn[rs], kn[rs], v[rs]          # (N, C) each

        # Block-diagonal K / V slabs: row h*N+j holds kn_b[j] / v_b[j] restricted
        # to head h's columns.  Built from one sublane-aligned replicate + mask.
        kbd = jnp.concatenate([kn_b] * H, axis=0) * mask_v     # (H*N, C)
        vbd = jnp.concatenate([v_b] * H, axis=0) * mask_v      # (H*N, C)

        # All-head scores in one lane-dense slab: s[i, h*N+j] = <qn_h[i], kn_h[j]>.
        s = lax.dot_general(qn_b, kbd, (((1,), (1,)), ((), ())),
                            preferred_element_type=jnp.float32)      # (N, H*N)

        # One row-max / one exp for all heads (softmax is shift-invariant per head).
        e = jnp.exp(s - jnp.max(s, axis=-1, keepdims=True))          # (N, H*N)
        sums = jnp.dot(e, seg, preferred_element_type=jnp.float32)   # (N, H)
        r = pl.reciprocal(sums, approx=True)             # EUP estimate
        r = r * (2.0 - sums * r)                         # one Newton step, (N,H) only

        # PV matmul on un-normalized probs, then per-head normalization
        # (row scaling commutes with the right matmul -> exact).
        o_b = jnp.dot(e, vbd, preferred_element_type=jnp.float32)    # (N, C)
        o_b = o_b * jnp.dot(r, expand, preferred_element_type=jnp.float32)
        outs.append(o_b)

    o = outs[0] if bb == 1 else jnp.concatenate(outs, axis=0)        # (R, C)

    # Single fused output projection + bias.
    o_ref[...] = (jnp.dot(o, wproj_ref[...], preferred_element_type=jnp.float32)
                  + bproj_ref[...]).astype(o_ref.dtype)


# ------------------------------- wrapper ------------------------------------ #

def attention_forward(x, w_qkv, w_proj, b_proj, num_heads):
    """Attention.forward.  x: (B, N, C); weights in nn.Linear (out, in) layout."""
    B, N, C = x.shape
    H = num_heads
    assert C % H == 0, "dim must be divisible by num_heads"
    D = C // H
    assert w_qkv.shape == (3 * C, C), "qkv weight must be (3C, C)"
    assert w_proj.shape == (C, C) and b_proj.shape == (C,)
    scale = D ** (-0.5)

    # Split + pre-transpose the qkv weight ONCE into three (in, out) blocks.
    wq_t = jnp.asarray(w_qkv[:C].T)
    wk_t = jnp.asarray(w_qkv[C:2 * C].T)
    wv_t = jnp.asarray(w_qkv[2 * C:].T)
    wproj_t = jnp.asarray(w_proj.T)

    # Host-precomputed structural constants (stay resident in VMEM).
    head_of_col = jnp.arange(C) // D                                   # (C,)
    same_head = head_of_col[:, None] == head_of_col[None, :]           # (C, C)
    pm = jnp.where(same_head, 1.0 / D, 0.0).astype(jnp.float32)
    pv = jnp.where(same_head, 1.0 / (D - 1), 0.0).astype(jnp.float32)
    head_of_row = jnp.arange(H * N) // N                               # (H*N,)
    mask_v = (head_of_row[:, None] == head_of_col[None, :]).astype(jnp.float32)
    seg = (head_of_row[:, None] == jnp.arange(H)[None, :]).astype(jnp.float32)
    expand = (jnp.arange(H)[:, None] == head_of_col[None, :]).astype(jnp.float32)

    # Grid strategy: single-TC chips (v5e/v6e) -> one grid step over all rows;
    # multi-TC chips (v7x) / unknown -> one batch per step, sharded over cores.
    try:
        kind = jax.devices()[0].device_kind.lower()
    except Exception:
        kind = ""
    single_tc = any(t in kind for t in
                    ("v5e", "v5 lite", "v5lite", "v6e", "v6 lite", "v6lite"))
    bb = B if single_tc else 1
    R = bb * N

    x2 = x.reshape(B * N, C)
    kern = partial(fused_attn_kernel, num_heads=H, head_dim=D, seq_len=N,
                   batch_block=bb, scale=scale)

    resident = lambda _i: (0, 0)
    out2 = pl.pallas_call(
        kern,
        out_shape=jax.ShapeDtypeStruct((B * N, C), x.dtype),
        grid=(B // bb,),
        in_specs=[
            pl.BlockSpec((R, C), lambda i: (i, 0)),        # x rows for this step
            pl.BlockSpec((C, C), resident),                # wq^T
            pl.BlockSpec((C, C), resident),                # wk^T
            pl.BlockSpec((C, C), resident),                # wv^T
            pl.BlockSpec((C, C), resident),                # w_proj^T
            pl.BlockSpec((1, C), resident),                # proj bias
            pl.BlockSpec((C, C), resident),                # pm
            pl.BlockSpec((C, C), resident),                # pv
            pl.BlockSpec((H * N, C), resident),            # head mask (slab rows)
            pl.BlockSpec((H * N, H), resident),            # segmented-sum matrix
            pl.BlockSpec((H, C), resident),                # head -> column expand
        ],
        out_specs=pl.BlockSpec((R, C), lambda i: (i, 0)),
        compiler_params=pltpu.CompilerParams(
            dimension_semantics=("parallel",)),
    )(x2, wq_t, wk_t, wv_t, wproj_t, b_proj.reshape(1, C),
      pm, pv, mask_v, seg, expand)

    return out2.reshape(B, N, C)


# --------------------------- pure-JAX reference ----------------------------- #

def attention_reference(x, w_qkv, w_proj, b_proj, num_heads):
    B, N, C = x.shape
    D = C // num_heads
    scale = D ** (-0.5)
    qkv = x @ w_qkv.T                                                  # (B, N, 3C)
    qkv = qkv.reshape(B, N, 3, num_heads, D).transpose(2, 0, 3, 1, 4)
    q, k, v = qkv[0], qkv[1], qkv[2]

    def standardize(t):
        m = t.mean(axis=-1, keepdims=True)
        s = jnp.sqrt(((t - m) ** 2).sum(axis=-1, keepdims=True) / (D - 1))
        return (t - m) / s

    q, k = standardize(q), standardize(k)
    attn = jax.nn.softmax(jnp.einsum("bhnd,bhmd->bhnm", q, k) * scale, axis=-1)
    o = jnp.einsum("bhnm,bhmd->bhnd", attn, v)
    o = o.transpose(0, 2, 1, 3).reshape(B, N, C)
    return o @ w_proj.T + b_proj


# ---------------------------------- main ------------------------------------ #

if __name__ == "__main__":
    B, N, C, H = 2, 8, 32, 8   # dim=32, num_heads=8 -> head_dim=4

    key = jax.random.PRNGKey(0)
    kx, kqkv, kproj_w, kproj_b = jax.random.split(key, 4)

    x = jax.random.normal(kx, (B, N, C), dtype=jnp.float32)

    # nn.Linear layout (out_features, in_features).
    w_qkv = 0.05 * jax.random.normal(kqkv, (3 * C, C), dtype=jnp.float32)
    w_proj = 0.05 * jax.random.normal(kproj_w, (C, C), dtype=jnp.float32)
    b_proj = 0.01 * jax.random.normal(kproj_b, (C,), dtype=jnp.float32)

    out = attention_forward(x, w_qkv, w_proj, b_proj, H)
    out = jax.block_until_ready(out)

    ref = attention_reference(x, w_qkv, w_proj, b_proj, H)
    assert out.shape == (B, N, C)
    assert jnp.allclose(out, ref, atol=1e-4, rtol=1e-3), "mismatch vs reference"

    print("KERNEL_OK")
</pallas_src>

<mosaic_0001>
module attributes {stable_mosaic.version = 11 : i64} {
  func.func @fused_attn_kernel(%arg0: i32, %arg1: memref<8x32xf32, #tpu.memory_space<vmem>>, %arg2: memref<32x32xf32, #tpu.memory_space<vmem>>, %arg3: memref<32x32xf32, #tpu.memory_space<vmem>>, %arg4: memref<32x32xf32, #tpu.memory_space<vmem>>, %arg5: memref<32x32xf32, #tpu.memory_space<vmem>>, %arg6: memref<1x32xf32, #tpu.memory_space<vmem>>, %arg7: memref<32x32xf32, #tpu.memory_space<vmem>>, %arg8: memref<32x32xf32, #tpu.memory_space<vmem>>, %arg9: memref<64x32xf32, #tpu.memory_space<vmem>>, %arg10: memref<64x8xf32, #tpu.memory_space<vmem>>, %arg11: memref<8x32xf32, #tpu.memory_space<vmem>>, %arg12: memref<8x32xf32, #tpu.memory_space<vmem>>) attributes {dimension_semantics = [#tpu.dimension_semantics<parallel>], iteration_bounds = array<i64: 2>, scalar_prefetch = 0 : i64, scratch_operands = 0 : i64, tpu.core_type = #tpu.core_type<tc>, window_params = [{transform_indices = @transform_0, window_bounds = array<i64: 8, 32>}, {pipeline_mode = #tpu.pipeline_mode<synchronous>, transform_indices = @transform_1, window_bounds = array<i64: 32, 32>}, {pipeline_mode = #tpu.pipeline_mode<synchronous>, transform_indices = @transform_2, window_bounds = array<i64: 32, 32>}, {pipeline_mode = #tpu.pipeline_mode<synchronous>, transform_indices = @transform_3, window_bounds = array<i64: 32, 32>}, {pipeline_mode = #tpu.pipeline_mode<synchronous>, transform_indices = @transform_4, window_bounds = array<i64: 32, 32>}, {pipeline_mode = #tpu.pipeline_mode<synchronous>, transform_indices = @transform_5, window_bounds = array<i64: 1, 32>}, {pipeline_mode = #tpu.pipeline_mode<synchronous>, transform_indices = @transform_6, window_bounds = array<i64: 32, 32>}, {pipeline_mode = #tpu.pipeline_mode<synchronous>, transform_indices = @transform_7, window_bounds = array<i64: 32, 32>}, {pipeline_mode = #tpu.pipeline_mode<synchronous>, transform_indices = @transform_8, window_bounds = array<i64: 64, 32>}, {pipeline_mode = #tpu.pipeline_mode<synchronous>, transform_indices = @transform_9, window_bounds = array<i64: 64, 8>}, {pipeline_mode = #tpu.pipeline_mode<synchronous>, transform_indices = @transform_10, window_bounds = array<i64: 8, 32>}, {transform_indices = @transform_11, window_bounds = array<i64: 8, 32>}]} {
    %c0 = arith.constant 0 : index
    %c0_0 = arith.constant 0 : index
    %0 = vector.load %arg1[%c0, %c0_0] : memref<8x32xf32, #tpu.memory_space<vmem>>, vector<8x32xf32>
    %c0_1 = arith.constant 0 : index
    %c0_2 = arith.constant 0 : index
    %1 = vector.load %arg2[%c0_1, %c0_2] : memref<32x32xf32, #tpu.memory_space<vmem>>, vector<32x32xf32>
    %cst = arith.constant dense<0.000000e+00> : vector<8x32xf32>
    %2 = tpu.matmul %0, %1, %cst {dimension_numbers = #tpu.dot_dimension_numbers<[1], [0], [0], [1], [0, 0, 1, 1], [], []>} : vector<8x32xf32>, vector<32x32xf32>, vector<8x32xf32> -> vector<8x32xf32>
    %c0_3 = arith.constant 0 : index
    %c0_4 = arith.constant 0 : index
    %3 = vector.load %arg3[%c0_3, %c0_4] : memref<32x32xf32, #tpu.memory_space<vmem>>, vector<32x32xf32>
    %cst_5 = arith.constant dense<0.000000e+00> : vector<8x32xf32>
    %4 = tpu.matmul %0, %3, %cst_5 {dimension_numbers = #tpu.dot_dimension_numbers<[1], [0], [0], [1], [0, 0, 1, 1], [], []>} : vector<8x32xf32>, vector<32x32xf32>, vector<8x32xf32> -> vector<8x32xf32>
    %c0_6 = arith.constant 0 : index
    %c0_7 = arith.constant 0 : index
    %5 = vector.load %arg4[%c0_6, %c0_7] : memref<32x32xf32, #tpu.memory_space<vmem>>, vector<32x32xf32>
    %cst_8 = arith.constant dense<0.000000e+00> : vector<8x32xf32>
    %6 = tpu.matmul %0, %5, %cst_8 {dimension_numbers = #tpu.dot_dimension_numbers<[1], [0], [0], [1], [0, 0, 1, 1], [], []>} : vector<8x32xf32>, vector<32x32xf32>, vector<8x32xf32> -> vector<8x32xf32>
    %c0_9 = arith.constant 0 : index
    %c0_10 = arith.constant 0 : index
    %7 = vector.load %arg7[%c0_9, %c0_10] : memref<32x32xf32, #tpu.memory_space<vmem>>, vector<32x32xf32>
    %c0_11 = arith.constant 0 : index
    %c0_12 = arith.constant 0 : index
    %8 = vector.load %arg8[%c0_11, %c0_12] : memref<32x32xf32, #tpu.memory_space<vmem>>, vector<32x32xf32>
    %cst_13 = arith.constant dense<0.000000e+00> : vector<8x32xf32>
    %9 = tpu.matmul %2, %7, %cst_13 {dimension_numbers = #tpu.dot_dimension_numbers<[1], [0], [0], [1], [0, 0, 1, 1], [], []>} : vector<8x32xf32>, vector<32x32xf32>, vector<8x32xf32> -> vector<8x32xf32>
    %10 = arith.subf %2, %9 : vector<8x32xf32>
    %11 = arith.mulf %10, %10 : vector<8x32xf32>
    %cst_14 = arith.constant dense<0.000000e+00> : vector<8x32xf32>
    %12 = tpu.matmul %11, %8, %cst_14 {dimension_numbers = #tpu.dot_dimension_numbers<[1], [0], [0], [1], [0, 0, 1, 1], [], []>} : vector<8x32xf32>, vector<32x32xf32>, vector<8x32xf32> -> vector<8x32xf32>
    %13 = math.rsqrt %12 : vector<8x32xf32>
    %cst_15 = arith.constant 5.000000e-01 : f32
    %14 = vector.broadcast %cst_15 : f32 to vector<8x32xf32>
    %15 = arith.mulf %13, %14 : vector<8x32xf32>
    %16 = arith.mulf %10, %15 : vector<8x32xf32>
    %cst_16 = arith.constant dense<0.000000e+00> : vector<8x32xf32>
    %17 = tpu.matmul %4, %7, %cst_16 {dimension_numbers = #tpu.dot_dimension_numbers<[1], [0], [0], [1], [0, 0, 1, 1], [], []>} : vector<8x32xf32>, vector<32x32xf32>, vector<8x32xf32> -> vector<8x32xf32>
    %18 = arith.subf %4, %17 : vector<8x32xf32>
    %19 = arith.mulf %18, %18 : vector<8x32xf32>
    %cst_17 = arith.constant dense<0.000000e+00> : vector<8x32xf32>
    %20 = tpu.matmul %19, %8, %cst_17 {dimension_numbers = #tpu.dot_dimension_numbers<[1], [0], [0], [1], [0, 0, 1, 1], [], []>} : vector<8x32xf32>, vector<32x32xf32>, vector<8x32xf32> -> vector<8x32xf32>
    %21 = math.rsqrt %20 : vector<8x32xf32>
    %22 = arith.mulf %18, %21 : vector<8x32xf32>
    %c0_18 = arith.constant 0 : index
    %c0_19 = arith.constant 0 : index
    %23 = vector.load %arg9[%c0_18, %c0_19] : memref<64x32xf32, #tpu.memory_space<vmem>>, vector<64x32xf32>
    %c0_20 = arith.constant 0 : index
    %c0_21 = arith.constant 0 : index
    %24 = vector.load %arg10[%c0_20, %c0_21] : memref<64x8xf32, #tpu.memory_space<vmem>>, vector<64x8xf32>
    %c0_22 = arith.constant 0 : index
    %c0_23 = arith.constant 0 : index
    %25 = vector.load %arg11[%c0_22, %c0_23] : memref<8x32xf32, #tpu.memory_space<vmem>>, vector<8x32xf32>
    %26 = tpu.concatenate %22, %22, %22, %22, %22, %22, %22, %22 in 0 : vector<8x32xf32>, vector<8x32xf32>, vector<8x32xf32>, vector<8x32xf32>, vector<8x32xf32>, vector<8x32xf32>, vector<8x32xf32>, vector<8x32xf32> -> vector<64x32xf32>
    %27 = arith.mulf %26, %23 : vector<64x32xf32>
    %28 = tpu.concatenate %6, %6, %6, %6, %6, %6, %6, %6 in 0 : vector<8x32xf32>, vector<8x32xf32>, vector<8x32xf32>, vector<8x32xf32>, vector<8x32xf32>, vector<8x32xf32>, vector<8x32xf32>, vector<8x32xf32> -> vector<64x32xf32>
    %29 = arith.mulf %28, %23 : vector<64x32xf32>
    %cst_24 = arith.constant dense<0.000000e+00> : vector<8x64xf32>
    %30 = tpu.matmul %16, %27, %cst_24 {dimension_numbers = #tpu.dot_dimension_numbers<[1], [1], [0], [0], [0, 0, 1, 0], [], []>} : vector<8x32xf32>, vector<64x32xf32>, vector<8x64xf32> -> vector<8x64xf32>
    %cst_25 = arith.constant dense<0xFF800000> : vector<8xf32>
    %31 = vector.multi_reduction <maximumf>, %30, %cst_25 [1] : vector<8x64xf32> to vector<8xf32>
    %32 = vector.shape_cast %31 : vector<8xf32> to vector<8x1xf32>
    %33 = vector.broadcast %32 : vector<8x1xf32> to vector<8x64xf32>
    %34 = arith.subf %30, %33 : vector<8x64xf32>
    %35 = math.exp %34 : vector<8x64xf32>
    %cst_26 = arith.constant dense<0.000000e+00> : vector<8x8xf32>
    %36 = tpu.matmul %35, %24, %cst_26 {dimension_numbers = #tpu.dot_dimension_numbers<[1], [0], [0], [1], [0, 0, 1, 1], [], []>} : vector<8x64xf32>, vector<64x8xf32>, vector<8x8xf32> -> vector<8x8xf32>
    %37 = tpu.reciprocal %36 {approx = true} : vector<8x8xf32> -> vector<8x8xf32>
    %38 = arith.mulf %36, %37 : vector<8x8xf32>
    %cst_27 = arith.constant 2.000000e+00 : f32
    %39 = vector.broadcast %cst_27 : f32 to vector<8x8xf32>
    %40 = arith.subf %39, %38 : vector<8x8xf32>
    %41 = arith.mulf %37, %40 : vector<8x8xf32>
    %cst_28 = arith.constant dense<0.000000e+00> : vector<8x32xf32>
    %42 = tpu.matmul %35, %29, %cst_28 {dimension_numbers = #tpu.dot_dimension_numbers<[1], [0], [0], [1], [0, 0, 1, 1], [], []>} : vector<8x64xf32>, vector<64x32xf32>, vector<8x32xf32> -> vector<8x32xf32>
    %cst_29 = arith.constant dense<0.000000e+00> : vector<8x32xf32>
    %43 = tpu.matmul %41, %25, %cst_29 {dimension_numbers = #tpu.dot_dimension_numbers<[1], [0], [0], [1], [0, 0, 1, 1], [], []>} : vector<8x8xf32>, vector<8x32xf32>, vector<8x32xf32> -> vector<8x32xf32>
    %44 = arith.mulf %42, %43 : vector<8x32xf32>
    %c0_30 = arith.constant 0 : index
    %c0_31 = arith.constant 0 : index
    %45 = vector.load %arg5[%c0_30, %c0_31] : memref<32x32xf32, #tpu.memory_space<vmem>>, vector<32x32xf32>
    %cst_32 = arith.constant dense<0.000000e+00> : vector<8x32xf32>
    %46 = tpu.matmul %44, %45, %cst_32 {dimension_numbers = #tpu.dot_dimension_numbers<[1], [0], [0], [1], [0, 0, 1, 1], [], []>} : vector<8x32xf32>, vector<32x32xf32>, vector<8x32xf32> -> vector<8x32xf32>
    %c0_33 = arith.constant 0 : index
    %c0_34 = arith.constant 0 : index
    %47 = vector.load %arg6[%c0_33, %c0_34] : memref<1x32xf32, #tpu.memory_space<vmem>>, vector<1x32xf32>
    %48 = vector.broadcast %47 : vector<1x32xf32> to vector<8x32xf32>
    %49 = arith.addf %46, %48 : vector<8x32xf32>
    %c0_35 = arith.constant 0 : index
    %c0_36 = arith.constant 0 : index
    %50 = vector.load %arg12[%c0_35, %c0_36] : memref<8x32xf32, #tpu.memory_space<vmem>>, vector<8x32xf32>
    tpu.vector_store %arg12[%c0_35, %c0_36], %49 {strides = array<i32>} : memref<8x32xf32, #tpu.memory_space<vmem>>, vector<8x32xf32>,
    return
  }
  func.func @transform_0(%arg0: i32) -> (i32, i32) {
    %c0_i32 = arith.constant 0 : i32
    %c0_i32_0 = arith.constant 0 : i32
    return %arg0, %c0_i32 : i32, i32
  }
  func.func @transform_1(%arg0: i32) -> (i32, i32) {
    %c0_i32 = arith.constant 0 : i32
    %c0_i32_0 = arith.constant 0 : i32
    %c0_i32_1 = arith.constant 0 : i32
    return %c0_i32, %c0_i32_0 : i32, i32
  }
  func.func @transform_2(%arg0: i32) -> (i32, i32) {
    %c0_i32 = arith.constant 0 : i32
    %c0_i32_0 = arith.constant 0 : i32
    %c0_i32_1 = arith.constant 0 : i32
    return %c0_i32, %c0_i32_0 : i32, i32
  }
  func.func @transform_3(%arg0: i32) -> (i32, i32) {
    %c0_i32 = arith.constant 0 : i32
    %c0_i32_0 = arith.constant 0 : i32
    %c0_i32_1 = arith.constant 0 : i32
    return %c0_i32, %c0_i32_0 : i32, i32
  }
  func.func @transform_4(%arg0: i32) -> (i32, i32) {
    %c0_i32 = arith.constant 0 : i32
    %c0_i32_0 = arith.constant 0 : i32
    %c0_i32_1 = arith.constant 0 : i32
    return %c0_i32, %c0_i32_0 : i32, i32
  }
  func.func @transform_5(%arg0: i32) -> (i32, i32) {
    %c0_i32 = arith.constant 0 : i32
    %c0_i32_0 = arith.constant 0 : i32
    %c0_i32_1 = arith.constant 0 : i32
    return %c0_i32, %c0_i32_0 : i32, i32
  }
  func.func @transform_6(%arg0: i32) -> (i32, i32) {
    %c0_i32 = arith.constant 0 : i32
    %c0_i32_0 = arith.constant 0 : i32
    %c0_i32_1 = arith.constant 0 : i32
    return %c0_i32, %c0_i32_0 : i32, i32
  }
  func.func @transform_7(%arg0: i32) -> (i32, i32) {
    %c0_i32 = arith.constant 0 : i32
    %c0_i32_0 = arith.constant 0 : i32
    %c0_i32_1 = arith.constant 0 : i32
    return %c0_i32, %c0_i32_0 : i32, i32
  }
  func.func @transform_8(%arg0: i32) -> (i32, i32) {
    %c0_i32 = arith.constant 0 : i32
    %c0_i32_0 = arith.constant 0 : i32
    %c0_i32_1 = arith.constant 0 : i32
    return %c0_i32, %c0_i32_0 : i32, i32
  }
  func.func @transform_9(%arg0: i32) -> (i32, i32) {
    %c0_i32 = arith.constant 0 : i32
    %c0_i32_0 = arith.constant 0 : i32
    %c0_i32_1 = arith.constant 0 : i32
    return %c0_i32, %c0_i32_0 : i32, i32
  }
  func.func @transform_10(%arg0: i32) -> (i32, i32) {
    %c0_i32 = arith.constant 0 : i32
    %c0_i32_0 = arith.constant 0 : i32
    %c0_i32_1 = arith.constant 0 : i32
    return %c0_i32, %c0_i32_0 : i32, i32
  }
  func.func @transform_11(%arg0: i32) -> (i32, i32) {
    %c0_i32 = arith.constant 0 : i32
    %c0_i32_0 = arith.constant 0 : i32
    return %arg0, %c0_i32 : i32, i32
  }
}

</mosaic_0001>

<llo_original>
// kernel: tpu_custom_call.1
$region0: #{tpu_custom_call.1}
  #allocation0 [shape = 'u32[]', space=smem, size = 0x4, offset = 0x4, fixed_abs, tag = 'smem constant byte address 0x4 - core index']
  #allocation1 [shape = 'u32[144,128]{1,0:T(1,128)}', space=vmem, size = 0x12000, scoped, tag = 'internal scratch']
  %s0 = inlined_call_operand.hbm [shape: f32[16,32], index: 0, kind: input, shape index: {}]
  %s1 = inlined_call_operand.vmem [shape: f32[32,32], index: 1, kind: input, shape index: {}]
  %s2 = inlined_call_operand.vmem [shape: f32[32,32], index: 2, kind: input, shape index: {}]
  %s3 = inlined_call_operand.vmem [shape: f32[32,32], index: 3, kind: input, shape index: {}]
  %s4 = inlined_call_operand.vmem [shape: f32[32,32], index: 4, kind: input, shape index: {}]
  %s5 = inlined_call_operand.vmem [shape: f32[1,32], index: 5, kind: input, shape index: {}]
  %s6 = inlined_call_operand.vmem [shape: f32[32,32], index: 6, kind: input, shape index: {}]
  %s7 = inlined_call_operand.hbm [shape: f32[32,32], index: 7, kind: input, shape index: {}]
  %s8 = inlined_call_operand.vmem [shape: f32[64,32], index: 8, kind: input, shape index: {}]
  %s9 = inlined_call_operand.vmem [shape: f32[64,8], index: 9, kind: input, shape index: {}]
  %s10 = inlined_call_operand.vmem [shape: f32[8,32], index: 10, kind: input, shape index: {}]
  %s11 = inlined_call_operand.hbm [shape: f32[16,32], index: 11, kind: output, shape index: {}]
  %s12 = sld [smem:[#allocation0]]
  $region85: #{tpu_custom_call.1} parent=0
    _
  %s14 = ssub.s32 1, %s12
  %s15 = scalar_select 0, %s14, %s12
  $region1: #{tpu_custom_call.1} parent=0
    #allocation2 [shape = 'u8[8192]{0}', space=vmem, size = 0x2000, scoped, tag = 'input window, operand 0']
    #allocation3 [shape = 's32[2]{0}', space=sflag, size = 0x8, scoped, tag = 'scoped memory for tpu_custom_call.1']
    #allocation4 [shape = 's32[2]{0}', space=sflag, size = 0x8, scoped, tag = 'scoped memory for tpu_custom_call.1']
    #allocation5 [shape = 'u8[16384]{0}', space=vmem, size = 0x4000, scoped, tag = 'input window, operand 7, single buffered']
    #allocation6 [shape = 's32[1]{0}', space=sflag, size = 0x4, scoped, tag = 'scoped memory for tpu_custom_call.1']
    #allocation7 [shape = 'u8[8192]{0}', space=vmem, size = 0x2000, scoped, tag = 'output window, operand 0']
    %16 = vsyncpa [#allocation3], 0
    %s17 = scalar_lea.sflag [#allocation3], 1
    %18 = vsyncpa %s17, 0
    %19 = vsyncpa [#allocation6], 0
    %20 = vsyncpa [#allocation4], 0
    %s21 = scalar_lea.sflag [#allocation4], 1
    %22 = vsyncpa %s21, 0
    loop: start=0, step=1, limit=4
    $region2: #{tpu_custom_call.1} parent=1 // loop_pre_header
      _
    $region3: #{tpu_custom_call.1} parent=1 // loop_header
      %s24 = sphi 0, %s28
      %p25 = scmp.ge.s32.totalorder %s24, 4
      %s34 = sphi 0, %s36
      %s37 = sphi 0, %s34
      %s38 = sphi 0, %s37
      %s54 = sphi 0, %s38
      %s58 = sphi 0, %s58
      %s60 = sphi 0, %s58
      %s61 = sphi 0, %s60
      %s75 = sphi 0, %s61
      %s79 = sphi 0, %s79
      %s81 = sphi 0, %s79
      %s82 = sphi 0, %s81
      %s96 = sphi 0, %s82
      %s100 = sphi 0, %s100
      %s102 = sphi 0, %s100
      %s103 = sphi 0, %s102
      %s117 = sphi 0, %s103
      %s121 = sphi 0, %s121
      %s123 = sphi 0, %s121
      %s124 = sphi 0, %s123
      %s138 = sphi 0, %s124
      %s142 = sphi 0, %s142
      %s144 = sphi 0, %s142
      %s145 = sphi 0, %s144
      %s159 = sphi 0, %s145
      %s163 = sphi 0, %s163
      %s165 = sphi 0, %s163
      %s166 = sphi 0, %s165
      %s180 = sphi 0, %s166
      %s184 = sphi 0, %s184
      %s186 = sphi 0, %s184
      %s187 = sphi 0, %s186
      %s201 = sphi 0, %s187
      %s205 = sphi 0, %s205
      %s207 = sphi 0, %s205
      %s208 = sphi 0, %s207
      %s222 = sphi 0, %s208
      %s226 = sphi 0, %s226
      %s228 = sphi 0, %s226
      %s229 = sphi 0, %s228
      %s243 = sphi 0, %s229
      %s247 = sphi 0, %s247
      %s249 = sphi 0, %s247
      %s250 = sphi 0, %s249
      %s264 = sphi 0, %s250
      %s270 = sphi 0, %s272
      %s273 = sphi 0, %s270
      %s274 = sphi 0, %s273
      %s290 = sphi 0, %s274
    $region4: #{tpu_custom_call.1} parent=1 // loop_header_branch
      %27 = sbr.rel (%p25) target = $region8
    $region5: #{tpu_custom_call.1} parent=1 // loop_body
      %s29 = ssub.s32 %s24, 1
      %s30 = ssub.s32 %s24, 2
      %s31 = sadd.s32 %s24, 1
      %s32 = ssub.s32 %s24, %s31
      %p33 = scmp.eq.s32.totalorder %s32, 0
      %s35 = sadd.s32 %s34, 1
      %s36 = scalar_select %p33, %s34, %s35
      %p39 = pneg %p33
      %p40 = scmp.eq.s32.totalorder %s24, 1
      %p41 = por %p39, %p40
      %p42 = scmp.ne.s32.totalorder %s34, %s37
      %p43 = scmp.eq.s32.totalorder %s24, 0
      %p44 = por %p42, %p43
      %p45 = scmp.ne.s32.totalorder %s34, %s37
      %p46 = scmp.eq.s32.totalorder %s29, 1
      %p47 = por %p45, %p46
      %p48 = scmp.ne.s32.totalorder %s37, %s38
      %p49 = scmp.eq.s32.totalorder %s29, 0
      %p50 = por %p48, %p49
      %p51 = scmp.ne.s32.totalorder %s37, %s38
      %p52 = scmp.eq.s32.totalorder %s30, 1
      %p53 = por %p51, %p52
      %p55 = scmp.ne.s32.totalorder %s38, %s54
      %p56 = scmp.eq.s32.totalorder %s30, 0
      %p57 = por %p55, %p56
      %s59 = sadd.s32 %s58, 1
      %p62 = scmp.eq.s32.totalorder %s24, 1
      %p63 = scmp.ne.s32.totalorder %s58, %s60
      %p64 = scmp.eq.s32.totalorder %s24, 0
      %p65 = por %p63, %p64
      %p66 = scmp.ne.s32.totalorder %s58, %s60
      %p67 = scmp.eq.s32.totalorder %s29, 1
      %p68 = por %p66, %p67
      %p69 = scmp.ne.s32.totalorder %s60, %s61
      %p70 = scmp.eq.s32.totalorder %s29, 0
      %p71 = por %p69, %p70
      %p72 = scmp.ne.s32.totalorder %s60, %s61
      %p73 = scmp.eq.s32.totalorder %s30, 1
      %p74 = por %p72, %p73
      %p76 = scmp.ne.s32.totalorder %s61, %s75
      %p77 = scmp.eq.s32.totalorder %s30, 0
      %p78 = por %p76, %p77
      %s80 = sadd.s32 %s79, 1
      %p83 = scmp.eq.s32.totalorder %s24, 1
      %p84 = scmp.ne.s32.totalorder %s79, %s81
      %p85 = scmp.eq.s32.totalorder %s24, 0
      %p86 = por %p84, %p85
      %p87 = scmp.ne.s32.totalorder %s79, %s81
      %p88 = scmp.eq.s32.totalorder %s29, 1
      %p89 = por %p87, %p88
      %p90 = scmp.ne.s32.totalorder %s81, %s82
      %p91 = scmp.eq.s32.totalorder %s29, 0
      %p92 = por %p90, %p91
      %p93 = scmp.ne.s32.totalorder %s81, %s82
      %p94 = scmp.eq.s32.totalorder %s30, 1
      %p95 = por %p93, %p94
      %p97 = scmp.ne.s32.totalorder %s82, %s96
      %p98 = scmp.eq.s32.totalorder %s30, 0
      %p99 = por %p97, %p98
      %s101 = sadd.s32 %s100, 1
      %p104 = scmp.eq.s32.totalorder %s24, 1
      %p105 = scmp.ne.s32.totalorder %s100, %s102
      %p106 = scmp.eq.s32.totalorder %s24, 0
      %p107 = por %p105, %p106
      %p108 = scmp.ne.s32.totalorder %s100, %s102
      %p109 = scmp.eq.s32.totalorder %s29, 1
      %p110 = por %p108, %p109
      %p111 = scmp.ne.s32.totalorder %s102, %s103
      %p112 = scmp.eq.s32.totalorder %s29, 0
      %p113 = por %p111, %p112
      %p114 = scmp.ne.s32.totalorder %s102, %s103
      %p115 = scmp.eq.s32.totalorder %s30, 1
      %p116 = por %p114, %p115
      %p118 = scmp.ne.s32.totalorder %s103, %s117
      %p119 = scmp.eq.s32.totalorder %s30, 0
      %p120 = por %p118, %p119
      %s122 = sadd.s32 %s121, 1
      %p125 = scmp.eq.s32.totalorder %s24, 1
      %p126 = scmp.ne.s32.totalorder %s121, %s123
      %p127 = scmp.eq.s32.totalorder %s24, 0
      %p128 = por %p126, %p127
      %p129 = scmp.ne.s32.totalorder %s121, %s123
      %p130 = scmp.eq.s32.totalorder %s29, 1
      %p131 = por %p129, %p130
      %p132 = scmp.ne.s32.totalorder %s123, %s124
      %p133 = scmp.eq.s32.totalorder %s29, 0
      %p134 = por %p132, %p133
      %p135 = scmp.ne.s32.totalorder %s123, %s124
      %p136 = scmp.eq.s32.totalorder %s30, 1
      %p137 = por %p135, %p136
      %p139 = scmp.ne.s32.totalorder %s124, %s138
      %p140 = scmp.eq.s32.totalorder %s30, 0
      %p141 = por %p139, %p140
      %s143 = sadd.s32 %s142, 1
      %p146 = scmp.eq.s32.totalorder %s24, 1
      %p147 = scmp.ne.s32.totalorder %s142, %s144
      %p148 = scmp.eq.s32.totalorder %s24, 0
      %p149 = por %p147, %p148
      %p150 = scmp.ne.s32.totalorder %s142, %s144
      %p151 = scmp.eq.s32.totalorder %s29, 1
      %p152 = por %p150, %p151
      %p153 = scmp.ne.s32.totalorder %s144, %s145
      %p154 = scmp.eq.s32.totalorder %s29, 0
      %p155 = por %p153, %p154
      %p156 = scmp.ne.s32.totalorder %s144, %s145
      %p157 = scmp.eq.s32.totalorder %s30, 1
      %p158 = por %p156, %p157
      %p160 = scmp.ne.s32.totalorder %s145, %s159
      %p161 = scmp.eq.s32.totalorder %s30, 0
      %p162 = por %p160, %p161
      %s164 = sadd.s32 %s163, 1
      %p167 = scmp.eq.s32.totalorder %s24, 1
      %p168 = scmp.ne.s32.totalorder %s163, %s165
      %p169 = scmp.eq.s32.totalorder %s24, 0
      %p170 = por %p168, %p169
      %p171 = scmp.ne.s32.totalorder %s163, %s165
      %p172 = scmp.eq.s32.totalorder %s29, 1
      %p173 = por %p171, %p172
      %p174 = scmp.ne.s32.totalorder %s165, %s166
      %p175 = scmp.eq.s32.totalorder %s29, 0
      %p176 = por %p174, %p175
      %p177 = scmp.ne.s32.totalorder %s165, %s166
      %p178 = scmp.eq.s32.totalorder %s30, 1
      %p179 = por %p177, %p178
      %p181 = scmp.ne.s32.totalorder %s166, %s180
      %p182 = scmp.eq.s32.totalorder %s30, 0
      %p183 = por %p181, %p182
      %s185 = sadd.s32 %s184, 1
      %p188 = scmp.eq.s32.totalorder %s24, 1
      %p189 = scmp.ne.s32.totalorder %s184, %s186
      %p190 = scmp.eq.s32.totalorder %s24, 0
      %p191 = por %p189, %p190
      %p192 = scmp.ne.s32.totalorder %s184, %s186
      %p193 = scmp.eq.s32.totalorder %s29, 1
      %p194 = por %p192, %p193
      %p195 = scmp.ne.s32.totalorder %s186, %s187
      %p196 = scmp.eq.s32.totalorder %s29, 0
      %p197 = por %p195, %p196
      %p198 = scmp.ne.s32.totalorder %s186, %s187
      %p199 = scmp.eq.s32.totalorder %s30, 1
      %p200 = por %p198, %p199
      %p202 = scmp.ne.s32.totalorder %s187, %s201
      %p203 = scmp.eq.s32.totalorder %s30, 0
      %p204 = por %p202, %p203
      %s206 = sadd.s32 %s205, 1
      %p209 = scmp.eq.s32.totalorder %s24, 1
      %p210 = scmp.ne.s32.totalorder %s205, %s207
      %p211 = scmp.eq.s32.totalorder %s24, 0
      %p212 = por %p210, %p211
      %p213 = scmp.ne.s32.totalorder %s205, %s207
      %p214 = scmp.eq.s32.totalorder %s29, 1
      %p215 = por %p213, %p214
      %p216 = scmp.ne.s32.totalorder %s207, %s208
      %p217 = scmp.eq.s32.totalorder %s29, 0
      %p218 = por %p216, %p217
      %p219 = scmp.ne.s32.totalorder %s207, %s208
      %p220 = scmp.eq.s32.totalorder %s30, 1
      %p221 = por %p219, %p220
      %p223 = scmp.ne.s32.totalorder %s208, %s222
      %p224 = scmp.eq.s32.totalorder %s30, 0
      %p225 = por %p223, %p224
      %s227 = sadd.s32 %s226, 1
      %p230 = scmp.eq.s32.totalorder %s24, 1
      %p231 = scmp.ne.s32.totalorder %s226, %s228
      %p232 = scmp.eq.s32.totalorder %s24, 0
      %p233 = por %p231, %p232
      %p234 = scmp.ne.s32.totalorder %s226, %s228
      %p235 = scmp.eq.s32.totalorder %s29, 1
      %p236 = por %p234, %p235
      %p237 = scmp.ne.s32.totalorder %s228, %s229
      %p238 = scmp.eq.s32.totalorder %s29, 0
      %p239 = por %p237, %p238
      %p240 = scmp.ne.s32.totalorder %s228, %s229
      %p241 = scmp.eq.s32.totalorder %s30, 1
      %p242 = por %p240, %p241
      %p244 = scmp.ne.s32.totalorder %s229, %s243
      %p245 = scmp.eq.s32.totalorder %s30, 0
      %p246 = por %p244, %p245
      %s248 = sadd.s32 %s247, 1
      %p251 = scmp.eq.s32.totalorder %s24, 1
      %p252 = scmp.ne.s32.totalorder %s247, %s249
      %p253 = scmp.eq.s32.totalorder %s24, 0
      %p254 = por %p252, %p253
      %p255 = scmp.ne.s32.totalorder %s247, %s249
      %p256 = scmp.eq.s32.totalorder %s29, 1
      %p257 = por %p255, %p256
      %p258 = scmp.ne.s32.totalorder %s249, %s250
      %p259 = scmp.eq.s32.totalorder %s29, 0
      %p260 = por %p258, %p259
      %p261 = scmp.ne.s32.totalorder %s249, %s250
      %p262 = scmp.eq.s32.totalorder %s30, 1
      %p263 = por %p261, %p262
      %p265 = scmp.ne.s32.totalorder %s250, %s264
      %p266 = scmp.eq.s32.totalorder %s30, 0
      %p267 = por %p265, %p266
      %s268 = ssub.s32 %s24, %s31
      %p269 = scmp.eq.s32.totalorder %s268, 0
      %s271 = sadd.s32 %s270, 1
      %s272 = scalar_select %p269, %s270, %s271
      %p275 = pneg %p269
      %p276 = scmp.eq.s32.totalorder %s24, 1
      %p277 = por %p275, %p276
      %p278 = scmp.ne.s32.totalorder %s270, %s273
      %p279 = scmp.eq.s32.totalorder %s24, 0
      %p280 = por %p278, %p279
      %p281 = scmp.ne.s32.totalorder %s270, %s273
      %p282 = scmp.eq.s32.totalorder %s29, 1
      %p283 = por %p281, %p282
      %p284 = scmp.ne.s32.totalorder %s273, %s274
      %p285 = scmp.eq.s32.totalorder %s29, 0
      %p286 = por %p284, %p285
      %p287 = scmp.ne.s32.totalorder %s273, %s274
      %p288 = scmp.eq.s32.totalorder %s30, 1
      %p289 = por %p287, %p288
      %p291 = scmp.ne.s32.totalorder %s274, %s290
      %p292 = scmp.eq.s32.totalorder %s30, 0
      %p293 = por %p291, %p292
      %p294 = scmp.le.s32.totalorder 1, %s24
      %p295 = scmp.lt.s32.totalorder %s24, 3
      %p296 = pnand %p294, %p295
      %p297 = pneg %p296
      // Predicated region
      $region9: #{tpu_custom_call.1} parent=5 // pred_check
        _
      $region10: #{tpu_custom_call.1} parent=5 // pred_check_branch
        %299 = sbr.rel (%p296) target = $region12
      $region11: #{tpu_custom_call.1} parent=5 // pred_region
        %s300 = ssub.s32 %s24, 1
        // Predicated region
        $region13: #{tpu_custom_call.1} parent=11 // pred_check
          %p301 = pneg %p71
        $region14: #{tpu_custom_call.1} parent=11 // pred_check_branch
          %303 = sbr.rel (%p301) target = $region16
        $region15: #{tpu_custom_call.1} parent=11 // pred_region
          _
        $region16: #{tpu_custom_call.1} parent=11 // pred_fallthru
          _
        // Predicated region
        $region17: #{tpu_custom_call.1} parent=11 // pred_check
          %p304 = pneg %p92
        $region18: #{tpu_custom_call.1} parent=11 // pred_check_branch
          %306 = sbr.rel (%p304) target = $region20
        $region19: #{tpu_custom_call.1} parent=11 // pred_region
          _
        $region20: #{tpu_custom_call.1} parent=11 // pred_fallthru
          _
        // Predicated region
        $region21: #{tpu_custom_call.1} parent=11 // pred_check
          %p307 = pneg %p113
        $region22: #{tpu_custom_call.1} parent=11 // pred_check_branch
          %309 = sbr.rel (%p307) target = $region24
        $region23: #{tpu_custom_call.1} parent=11 // pred_region
          _
        $region24: #{tpu_custom_call.1} parent=11 // pred_fallthru
          _
        // Predicated region
        $region25: #{tpu_custom_call.1} parent=11 // pred_check
          %p310 = pneg %p134
        $region26: #{tpu_custom_call.1} parent=11 // pred_check_branch
          %312 = sbr.rel (%p310) target = $region28
        $region27: #{tpu_custom_call.1} parent=11 // pred_region
          _
        $region28: #{tpu_custom_call.1} parent=11 // pred_fallthru
          _
        // Predicated region
        $region29: #{tpu_custom_call.1} parent=11 // pred_check
          %p313 = pneg %p155
        $region30: #{tpu_custom_call.1} parent=11 // pred_check_branch
          %315 = sbr.rel (%p313) target = $region32
        $region31: #{tpu_custom_call.1} parent=11 // pred_region
          _
        $region32: #{tpu_custom_call.1} parent=11 // pred_fallthru
          _
        // Predicated region
        $region33: #{tpu_custom_call.1} parent=11 // pred_check
          %p316 = pneg %p176
        $region34: #{tpu_custom_call.1} parent=11 // pred_check_branch
          %318 = sbr.rel (%p316) target = $region36
        $region35: #{tpu_custom_call.1} parent=11 // pred_region
          _
        $region36: #{tpu_custom_call.1} parent=11 // pred_fallthru
          _
        // Predicated region
        $region37: #{tpu_custom_call.1} parent=11 // pred_check
          %p319 = pneg %p197
        $region38: #{tpu_custom_call.1} parent=11 // pred_check_branch
          %321 = sbr.rel (%p319) target = $region40
        $region39: #{tpu_custom_call.1} parent=11 // pred_region
          %s323 = ssub.s32 512, 512
          %324 = vsyncadd [#allocation6], %s323
          %s325 = sshll.u32 [#allocation5], 4
          %s326 = int_to_ptr.vmem [resolvable:$true] %s325
          %331 = dma.hbm_to_vmem [thread:$0]  %s7, 512, %s326, [#allocation6], 128, 128, 8
        $region40: #{tpu_custom_call.1} parent=11 // pred_fallthru
          _
        // Predicated region
        $region41: #{tpu_custom_call.1} parent=11 // pred_check
          %p332 = pneg %p218
        $region42: #{tpu_custom_call.1} parent=11 // pred_check_branch
          %334 = sbr.rel (%p332) target = $region44
        $region43: #{tpu_custom_call.1} parent=11 // pred_region
          _
        $region44: #{tpu_custom_call.1} parent=11 // pred_fallthru
          _
        // Predicated region
        $region45: #{tpu_custom_call.1} parent=11 // pred_check
          %p335 = pneg %p239
        $region46: #{tpu_custom_call.1} parent=11 // pred_check_branch
          %337 = sbr.rel (%p335) target = $region48
        $region47: #{tpu_custom_call.1} parent=11 // pred_region
          _
        $region48: #{tpu_custom_call.1} parent=11 // pred_fallthru
          _
        // Predicated region
        $region49: #{tpu_custom_call.1} parent=11 // pred_check
          %p338 = pneg %p260
        $region50: #{tpu_custom_call.1} parent=11 // pred_check_branch
          %340 = sbr.rel (%p338) target = $region52
        $region51: #{tpu_custom_call.1} parent=11 // pred_region
          _
        $region52: #{tpu_custom_call.1} parent=11 // pred_fallthru
          _
      $region12: #{tpu_custom_call.1} parent=5 // pred_fallthru
        _
      %p341 = scmp.lt.s32.totalorder %s24, 2
      // Predicated region
      $region53: #{tpu_custom_call.1} parent=5 // pred_check
        %p342 = pneg %p341
      $region54: #{tpu_custom_call.1} parent=5 // pred_check_branch
        %344 = sbr.rel (%p342) target = $region56
      $region55: #{tpu_custom_call.1} parent=5 // pred_region
        // Predicated region
        $region57: #{tpu_custom_call.1} parent=55 // pred_check
          %p345 = pneg %p44
        $region58: #{tpu_custom_call.1} parent=55 // pred_check_branch
          %347 = sbr.rel (%p345) target = $region60
        $region59: #{tpu_custom_call.1} parent=55 // pred_region
          %s348 = sand.u32 %s34, 1
          %s349 = scalar_lea.sflag [#allocation3], %s348
          %s350 = sand.u32 %s34, 1
          %s351 = smul.addr %s350, 8
          %s352 = scalar_lea.vmem [#allocation2], %s351
          %s354 = ssub.s32 128, 128
          %355 = vsyncadd %s349, %s354
          %s356 = smul.addr %s24, 128
          %s357 = scalar_lea.hbm %s0, %s356
          %s359 = sshll.u32 %s352, 4
          %s360 = int_to_ptr.vmem [resolvable:$true] %s359
          %362 = dma.hbm_to_vmem [thread:$0]  %s357, 128, %s360, %s349
        $region60: #{tpu_custom_call.1} parent=55 // pred_fallthru
          _
      $region56: #{tpu_custom_call.1} parent=5 // pred_fallthru
        _
      %p363 = scmp.le.s32.totalorder 1, %s24
      %p364 = scmp.lt.s32.totalorder %s24, 3
      %p365 = pnand %p363, %p364
      %p366 = pneg %p365
      // Predicated region
      $region61: #{tpu_custom_call.1} parent=5 // pred_check
        _
      $region62: #{tpu_custom_call.1} parent=5 // pred_check_branch
        %368 = sbr.rel (%p365) target = $region64
      $region63: #{tpu_custom_call.1} parent=5 // pred_region
        %s369 = ssub.s32 %s24, 1
        %s370 = sand.u32 %s37, 1
        %s371 = scalar_lea.sflag [#allocation3], %s370
        %s372 = sand.u32 %s37, 1
        %s373 = smul.addr %s372, 8
        %s374 = scalar_lea.vmem [#allocation2], %s373
        // Predicated region
        $region65: #{tpu_custom_call.1} parent=63 // pred_check
          %p375 = pneg %p50
        $region66: #{tpu_custom_call.1} parent=63 // pred_check_branch
          %377 = sbr.rel (%p375) target = $region68
        $region67: #{tpu_custom_call.1} parent=63 // pred_region
          %378 = dma.done %s371, 128
        $region68: #{tpu_custom_call.1} parent=63 // pred_fallthru
          _
        // Predicated region
        $region69: #{tpu_custom_call.1} parent=63 // pred_check
          %p379 = pneg %p197
        $region70: #{tpu_custom_call.1} parent=63 // pred_check_branch
          %381 = sbr.rel (%p379) target = $region72
        $region71: #{tpu_custom_call.1} parent=63 // pred_region
          %382 = dma.done [#allocation6], 512
        $region72: #{tpu_custom_call.1} parent=63 // pred_fallthru
          _
        %s383 = sand.u32 %s37, 1
        %s384 = scalar_lea.sflag [#allocation3], %s383
        %s385 = sand.u32 %s37, 1
        %s386 = smul.addr %s385, 8
        %s387 = scalar_lea.vmem [#allocation2], %s386
        %p388 = pneg %p50
        %p389 = pneg %p47
        %p390 = pneg %p71
        %p391 = pneg %p68
        %p392 = pneg %p92
        %p393 = pneg %p89
        %p394 = pneg %p113
        %p395 = pneg %p110
        %p396 = pneg %p134
        %p397 = pneg %p131
        %p398 = pneg %p155
        %p399 = pneg %p152
        %p400 = pneg %p176
        %p401 = pneg %p173
        %p402 = pneg %p197
        %p403 = pneg %p194
        %p404 = pneg %p218
        %p405 = pneg %p215
        %p406 = pneg %p239
        %p407 = pneg %p236
        %p408 = pneg %p260
        %p409 = pneg %p257
        %p410 = pneg %p286
        %p411 = pneg %p283
        %s412 = sand.u32 %s273, 1
        %s413 = scalar_lea.sflag [#allocation4], %s412
        %s414 = sand.u32 %s273, 1
        %s415 = smul.addr %s414, 8
        %s416 = scalar_lea.vmem [#allocation7], %s415
        %v417 = vld [vmem:[%s374] sm:$0xff]
        %v418 = vld [vmem:[%s1] sm:$0xff]
        %v419 = vld [vmem:[%s1 + $0x8] sm:$0xff]
        %v420 = vld [vmem:[%s1 + $0x10] sm:$0xff]
        %v421 = vld [vmem:[%s1 + $0x18] sm:$0xff]
        %vm422 = vcmask 261120
        %v424 = vsel %vm422, %v417, 0
        %426 = vmatprep.subr.mxu0 0.0
        %427 = vmatpush1.msra.mxu0 0.0
        %428 = vmatprep.subr.mxu0 0.0
        %429 = vmatpush1.msra.mxu0 0.0
        %430 = vmatprep.subr.mxu0 0.0
        %431 = vmatpush1.msra.mxu0 0.0
        %432 = vmatprep.subr.mxu0 0.0
        %433 = vmatpush1.msra.mxu0 0.0
        %434 = vmatprep.subr.mxu0 0.0
        %435 = vmatpush1.msra.mxu0 0.0
        %436 = vmatprep.subr.mxu0 0.0
        %437 = vmatpush1.msra.mxu0 0.0
        %438 = vmatprep.subr.mxu0 0.0
        %439 = vmatpush1.msra.mxu0 0.0
        %440 = vmatprep.subr.mxu0 0.0
        %441 = vmatpush1.msra.mxu0 0.0
        %442 = vmatprep.subr.mxu0 0.0
        %443 = vmatpush1.msra.mxu0 0.0
        %444 = vmatprep.subr.mxu0 0.0
        %445 = vmatpush1.msra.mxu0 0.0
        %446 = vmatprep.subr.mxu0 0.0
        %447 = vmatpush1.msra.mxu0 0.0
        %448 = vmatprep.subr.mxu0 0.0
        %449 = vmatpush1.msra.mxu0 0.0
        %450 = vmatprep.subr.mxu0 0.0
        %451 = vmatpush1.msra.mxu0 %v421
        %452 = vmatprep.subr.mxu0 0.0
        %453 = vmatpush1.msra.mxu0 %v420
        %454 = vmatprep.subr.mxu0 0.0
        %455 = vmatpush1.msra.mxu0 %v419
        %456 = vmatprep.subr.mxu0 0.0
        %457 = vmatpush1.msra.mxu0 %v418
        %458 = vmatprep.subr.mxu0 0.0
        %459 = vmatpush2.msra.mxu0 0.0
        %460 = vmatprep.subr.mxu0 0.0
        %461 = vmatpush2.msra.mxu0 0.0
        %462 = vmatprep.subr.mxu0 0.0
        %463 = vmatpush2.msra.mxu0 0.0
        %464 = vmatprep.subr.mxu0 0.0
        %465 = vmatpush2.msra.mxu0 0.0
        %466 = vmatprep.subr.mxu0 0.0
        %467 = vmatpush2.msra.mxu0 0.0
        %468 = vmatprep.subr.mxu0 0.0
        %469 = vmatpush2.msra.mxu0 0.0
        %470 = vmatprep.subr.mxu0 0.0
        %471 = vmatpush2.msra.mxu0 0.0
        %472 = vmatprep.subr.mxu0 0.0
        %473 = vmatpush2.msra.mxu0 0.0
        %474 = vmatprep.subr.mxu0 0.0
        %475 = vmatpush2.msra.mxu0 0.0
        %476 = vmatprep.subr.mxu0 0.0
        %477 = vmatpush2.msra.mxu0 0.0
        %478 = vmatprep.subr.mxu0 0.0
        %479 = vmatpush2.msra.mxu0 0.0
        %480 = vmatprep.subr.mxu0 0.0
        %481 = vmatpush2.msra.mxu0 0.0
        %482 = vmatprep.subr.mxu0 0.0
        %483 = vmatpush2.msra.mxu0 0.0
        %484 = vmatprep.subr.mxu0 0.0
        %485 = vmatpush2.msra.mxu0 0.0
        %486 = vmatprep.subr.mxu0 0.0
        %487 = vmatpush2.msra.mxu0 0.0
        %488 = vmatprep.subr.mxu0 0.0
        %489 = vmatpush2.msra.mxu0 0.0
        %490 = vmatprep.mubr.f32.mxu0 0.0
        %491 = vmatmul.mubr.f32.gmra.mxu0 %v424
        %v492 = vpop.f32.mrf.mxu0
        %v493 = vadd.f32 0.0, %v492
        %v494 = vpop.f32.mrf.mxu0
        %495 = vdwg.mxu0
        %v496 = vld [vmem:[%s2] sm:$0xff]
        %v497 = vld [vmem:[%s2 + $0x8] sm:$0xff]
        %v498 = vld [vmem:[%s2 + $0x10] sm:$0xff]
        %v499 = vld [vmem:[%s2 + $0x18] sm:$0xff]
        %500 = vmatprep.subr.mxu0 0.0
        %501 = vmatpush1.msra.mxu0 0.0
        %502 = vmatprep.subr.mxu0 0.0
        %503 = vmatpush1.msra.mxu0 0.0
        %504 = vmatprep.subr.mxu0 0.0
        %505 = vmatpush1.msra.mxu0 0.0
        %506 = vmatprep.subr.mxu0 0.0
        %507 = vmatpush1.msra.mxu0 0.0
        %508 = vmatprep.subr.mxu0 0.0
        %509 = vmatpush1.msra.mxu0 0.0
        %510 = vmatprep.subr.mxu0 0.0
        %511 = vmatpush1.msra.mxu0 0.0
        %512 = vmatprep.subr.mxu0 0.0
        %513 = vmatpush1.msra.mxu0 0.0
        %514 = vmatprep.subr.mxu0 0.0
        %515 = vmatpush1.msra.mxu0 0.0
        %516 = vmatprep.subr.mxu0 0.0
        %517 = vmatpush1.msra.mxu0 0.0
        %518 = vmatprep.subr.mxu0 0.0
        %519 = vmatpush1.msra.mxu0 0.0
        %520 = vmatprep.subr.mxu0 0.0
        %521 = vmatpush1.msra.mxu0 0.0
        %522 = vmatprep.subr.mxu0 0.0
        %523 = vmatpush1.msra.mxu0 0.0
        %524 = vmatprep.subr.mxu0 0.0
        %525 = vmatpush1.msra.mxu0 %v499
        %526 = vmatprep.subr.mxu0 0.0
        %527 = vmatpush1.msra.mxu0 %v498
        %528 = vmatprep.subr.mxu0 0.0
        %529 = vmatpush1.msra.mxu0 %v497
        %530 = vmatprep.subr.mxu0 0.0
        %531 = vmatpush1.msra.mxu0 %v496
        %532 = vmatprep.subr.mxu0 0.0
        %533 = vmatpush2.msra.mxu0 0.0
        %534 = vmatprep.subr.mxu0 0.0
        %535 = vmatpush2.msra.mxu0 0.0
        %536 = vmatprep.subr.mxu0 0.0
        %537 = vmatpush2.msra.mxu0 0.0
        %538 = vmatprep.subr.mxu0 0.0
        %539 = vmatpush2.msra.mxu0 0.0
        %540 = vmatprep.subr.mxu0 0.0
        %541 = vmatpush2.msra.mxu0 0.0
        %542 = vmatprep.subr.mxu0 0.0
        %543 = vmatpush2.msra.mxu0 0.0
        %544 = vmatprep.subr.mxu0 0.0
        %545 = vmatpush2.msra.mxu0 0.0
        %546 = vmatprep.subr.mxu0 0.0
        %547 = vmatpush2.msra.mxu0 0.0
        %548 = vmatprep.subr.mxu0 0.0
        %549 = vmatpush2.msra.mxu0 0.0
        %550 = vmatprep.subr.mxu0 0.0
        %551 = vmatpush2.msra.mxu0 0.0
        %552 = vmatprep.subr.mxu0 0.0
        %553 = vmatpush2.msra.mxu0 0.0
        %554 = vmatprep.subr.mxu0 0.0
        %555 = vmatpush2.msra.mxu0 0.0
        %556 = vmatprep.subr.mxu0 0.0
        %557 = vmatpush2.msra.mxu0 0.0
        %558 = vmatprep.subr.mxu0 0.0
        %559 = vmatpush2.msra.mxu0 0.0
        %560 = vmatprep.subr.mxu0 0.0
        %561 = vmatpush2.msra.mxu0 0.0
        %562 = vmatprep.subr.mxu0 0.0
        %563 = vmatpush2.msra.mxu0 0.0
        %564 = vmatprep.mubr.f32.mxu0 0.0
        %565 = vmatmul.mubr.f32.gmra.mxu0 %v424
        %v566 = vpop.f32.mrf.mxu0
        %v567 = vadd.f32 0.0, %v566
        %v568 = vpop.f32.mrf.mxu0
        %569 = vdwg.mxu0
        %v570 = vld [vmem:[%s3] sm:$0xff]
        %v571 = vld [vmem:[%s3 + $0x8] sm:$0xff]
        %v572 = vld [vmem:[%s3 + $0x10] sm:$0xff]
        %v573 = vld [vmem:[%s3 + $0x18] sm:$0xff]
        %574 = vmatprep.subr.mxu0 0.0
        %575 = vmatpush1.msra.mxu0 0.0
        %576 = vmatprep.subr.mxu0 0.0
        %577 = vmatpush1.msra.mxu0 0.0
        %578 = vmatprep.subr.mxu0 0.0
        %579 = vmatpush1.msra.mxu0 0.0
        %580 = vmatprep.subr.mxu0 0.0
        %581 = vmatpush1.msra.mxu0 0.0
        %582 = vmatprep.subr.mxu0 0.0
        %583 = vmatpush1.msra.mxu0 0.0
        %584 = vmatprep.subr.mxu0 0.0
        %585 = vmatpush1.msra.mxu0 0.0
        %586 = vmatprep.subr.mxu0 0.0
        %587 = vmatpush1.msra.mxu0 0.0
        %588 = vmatprep.subr.mxu0 0.0
        %589 = vmatpush1.msra.mxu0 0.0
        %590 = vmatprep.subr.mxu0 0.0
        %591 = vmatpush1.msra.mxu0 0.0
        %592 = vmatprep.subr.mxu0 0.0
        %593 = vmatpush1.msra.mxu0 0.0
        %594 = vmatprep.subr.mxu0 0.0
        %595 = vmatpush1.msra.mxu0 0.0
        %596 = vmatprep.subr.mxu0 0.0
        %597 = vmatpush1.msra.mxu0 0.0
        %598 = vmatprep.subr.mxu0 0.0
        %599 = vmatpush1.msra.mxu0 %v573
        %600 = vmatprep.subr.mxu0 0.0
        %601 = vmatpush1.msra.mxu0 %v572
        %602 = vmatprep.subr.mxu0 0.0
        %603 = vmatpush1.msra.mxu0 %v571
        %604 = vmatprep.subr.mxu0 0.0
        %605 = vmatpush1.msra.mxu0 %v570
        %606 = vmatprep.subr.mxu0 0.0
        %607 = vmatpush2.msra.mxu0 0.0
        %608 = vmatprep.subr.mxu0 0.0
        %609 = vmatpush2.msra.mxu0 0.0
        %610 = vmatprep.subr.mxu0 0.0
        %611 = vmatpush2.msra.mxu0 0.0
        %612 = vmatprep.subr.mxu0 0.0
        %613 = vmatpush2.msra.mxu0 0.0
        %614 = vmatprep.subr.mxu0 0.0
        %615 = vmatpush2.msra.mxu0 0.0
        %616 = vmatprep.subr.mxu0 0.0
        %617 = vmatpush2.msra.mxu0 0.0
        %618 = vmatprep.subr.mxu0 0.0
        %619 = vmatpush2.msra.mxu0 0.0
        %620 = vmatprep.subr.mxu0 0.0
        %621 = vmatpush2.msra.mxu0 0.0
        %622 = vmatprep.subr.mxu0 0.0
        %623 = vmatpush2.msra.mxu0 0.0
        %624 = vmatprep.subr.mxu0 0.0
        %625 = vmatpush2.msra.mxu0 0.0
        %626 = vmatprep.subr.mxu0 0.0
        %627 = vmatpush2.msra.mxu0 0.0
        %628 = vmatprep.subr.mxu0 0.0
        %629 = vmatpush2.msra.mxu0 0.0
        %630 = vmatprep.subr.mxu0 0.0
        %631 = vmatpush2.msra.mxu0 0.0
        %632 = vmatprep.subr.mxu0 0.0
        %633 = vmatpush2.msra.mxu0 0.0
        %634 = vmatprep.subr.mxu0 0.0
        %635 = vmatpush2.msra.mxu0 0.0
        %636 = vmatprep.subr.mxu0 0.0
        %637 = vmatpush2.msra.mxu0 0.0
        %638 = vmatprep.mubr.f32.mxu0 0.0
        %639 = vmatmul.mubr.f32.gmra.mxu0 %v424
        %v640 = vpop.f32.mrf.mxu0
        %v641 = vadd.f32 0.0, %v640
        %v642 = vpop.f32.mrf.mxu0
        %643 = vdwg.mxu0
        %v644 = vld [vmem:[%s6] sm:$0xff]
        %v645 = vld [vmem:[%s6 + $0x8] sm:$0xff]
        %v646 = vld [vmem:[%s6 + $0x10] sm:$0xff]
        %v647 = vld [vmem:[%s6 + $0x18] sm:$0xff]
        %v648 = vld [vmem:[#allocation5] sm:$0xff]
        %v649 = vld [vmem:[#allocation5 + $0x8] sm:$0xff]
        %v650 = vld [vmem:[#allocation5 + $0x10] sm:$0xff]
        %v651 = vld [vmem:[#allocation5 + $0x18] sm:$0xff]
        %v653 = vsel %vm422, %v493, 0
        %655 = vmatprep.subr.mxu0 0.0
        %656 = vmatpush1.msra.mxu0 0.0
        %657 = vmatprep.subr.mxu0 0.0
        %658 = vmatpush1.msra.mxu0 0.0
        %659 = vmatprep.subr.mxu0 0.0
        %660 = vmatpush1.msra.mxu0 0.0
        %661 = vmatprep.subr.mxu0 0.0
        %662 = vmatpush1.msra.mxu0 0.0
        %663 = vmatprep.subr.mxu0 0.0
        %664 = vmatpush1.msra.mxu0 0.0
        %665 = vmatprep.subr.mxu0 0.0
        %666 = vmatpush1.msra.mxu0 0.0
        %667 = vmatprep.subr.mxu0 0.0
        %668 = vmatpush1.msra.mxu0 0.0
        %669 = vmatprep.subr.mxu0 0.0
        %670 = vmatpush1.msra.mxu0 0.0
        %671 = vmatprep.subr.mxu0 0.0
        %672 = vmatpush1.msra.mxu0 0.0
        %673 = vmatprep.subr.mxu0 0.0
        %674 = vmatpush1.msra.mxu0 0.0
        %675 = vmatprep.subr.mxu0 0.0
        %676 = vmatpush1.msra.mxu0 0.0
        %677 = vmatprep.subr.mxu0 0.0
        %678 = vmatpush1.msra.mxu0 0.0
        %679 = vmatprep.subr.mxu0 0.0
        %680 = vmatpush1.msra.mxu0 %v647
        %681 = vmatprep.subr.mxu0 0.0
        %682 = vmatpush1.msra.mxu0 %v646
        %683 = vmatprep.subr.mxu0 0.0
        %684 = vmatpush1.msra.mxu0 %v645
        %685 = vmatprep.subr.mxu0 0.0
        %686 = vmatpush1.msra.mxu0 %v644
        %687 = vmatprep.subr.mxu0 0.0
        %688 = vmatpush2.msra.mxu0 0.0
        %689 = vmatprep.subr.mxu0 0.0
        %690 = vmatpush2.msra.mxu0 0.0
        %691 = vmatprep.subr.mxu0 0.0
        %692 = vmatpush2.msra.mxu0 0.0
        %693 = vmatprep.subr.mxu0 0.0
        %694 = vmatpush2.msra.mxu0 0.0
        %695 = vmatprep.subr.mxu0 0.0
        %696 = vmatpush2.msra.mxu0 0.0
        %697 = vmatprep.subr.mxu0 0.0
        %698 = vmatpush2.msra.mxu0 0.0
        %699 = vmatprep.subr.mxu0 0.0
        %700 = vmatpush2.msra.mxu0 0.0
        %701 = vmatprep.subr.mxu0 0.0
        %702 = vmatpush2.msra.mxu0 0.0
        %703 = vmatprep.subr.mxu0 0.0
        %704 = vmatpush2.msra.mxu0 0.0
        %705 = vmatprep.subr.mxu0 0.0
        %706 = vmatpush2.msra.mxu0 0.0
        %707 = vmatprep.subr.mxu0 0.0
        %708 = vmatpush2.msra.mxu0 0.0
        %709 = vmatprep.subr.mxu0 0.0
        %710 = vmatpush2.msra.mxu0 0.0
        %711 = vmatprep.subr.mxu0 0.0
        %712 = vmatpush2.msra.mxu0 0.0
        %713 = vmatprep.subr.mxu0 0.0
        %714 = vmatpush2.msra.mxu0 0.0
        %715 = vmatprep.subr.mxu0 0.0
        %716 = vmatpush2.msra.mxu0 0.0
        %717 = vmatprep.subr.mxu0 0.0
        %718 = vmatpush2.msra.mxu0 0.0
        %719 = vmatprep.mubr.f32.mxu0 0.0
        %720 = vmatmul.mubr.f32.gmra.mxu0 %v653
        %v721 = vpop.f32.mrf.mxu0
        %v722 = vadd.f32 0.0, %v721
        %v723 = vpop.f32.mrf.mxu0
        %724 = vdwg.mxu0
        %v725 = vsub.f32 %v493, %v722
        %v726 = vmul.f32 %v725, %v725
        %v728 = vsel %vm422, %v726, 0
        %730 = vmatprep.subr.mxu0 0.0
        %731 = vmatpush1.msra.mxu0 0.0
        %732 = vmatprep.subr.mxu0 0.0
        %733 = vmatpush1.msra.mxu0 0.0
        %734 = vmatprep.subr.mxu0 0.0
        %735 = vmatpush1.msra.mxu0 0.0
        %736 = vmatprep.subr.mxu0 0.0
        %737 = vmatpush1.msra.mxu0 0.0
        %738 = vmatprep.subr.mxu0 0.0
        %739 = vmatpush1.msra.mxu0 0.0
        %740 = vmatprep.subr.mxu0 0.0
        %741 = vmatpush1.msra.mxu0 0.0
        %742 = vmatprep.subr.mxu0 0.0
        %743 = vmatpush1.msra.mxu0 0.0
        %744 = vmatprep.subr.mxu0 0.0
        %745 = vmatpush1.msra.mxu0 0.0
        %746 = vmatprep.subr.mxu0 0.0
        %747 = vmatpush1.msra.mxu0 0.0
        %748 = vmatprep.subr.mxu0 0.0
        %749 = vmatpush1.msra.mxu0 0.0
        %750 = vmatprep.subr.mxu0 0.0
        %751 = vmatpush1.msra.mxu0 0.0
        %752 = vmatprep.subr.mxu0 0.0
        %753 = vmatpush1.msra.mxu0 0.0
        %754 = vmatprep.subr.mxu0 0.0
        %755 = vmatpush1.msra.mxu0 %v651
        %756 = vmatprep.subr.mxu0 0.0
        %757 = vmatpush1.msra.mxu0 %v650
        %758 = vmatprep.subr.mxu0 0.0
        %759 = vmatpush1.msra.mxu0 %v649
        %760 = vmatprep.subr.mxu0 0.0
        %761 = vmatpush1.msra.mxu0 %v648
        %762 = vmatprep.subr.mxu0 0.0
        %763 = vmatpush2.msra.mxu0 0.0
        %764 = vmatprep.subr.mxu0 0.0
        %765 = vmatpush2.msra.mxu0 0.0
        %766 = vmatprep.subr.mxu0 0.0
        %767 = vmatpush2.msra.mxu0 0.0
        %768 = vmatprep.subr.mxu0 0.0
        %769 = vmatpush2.msra.mxu0 0.0
        %770 = vmatprep.subr.mxu0 0.0
        %771 = vmatpush2.msra.mxu0 0.0
        %772 = vmatprep.subr.mxu0 0.0
        %773 = vmatpush2.msra.mxu0 0.0
        %774 = vmatprep.subr.mxu0 0.0
        %775 = vmatpush2.msra.mxu0 0.0
        %776 = vmatprep.subr.mxu0 0.0
        %777 = vmatpush2.msra.mxu0 0.0
        %778 = vmatprep.subr.mxu0 0.0
        %779 = vmatpush2.msra.mxu0 0.0
        %780 = vmatprep.subr.mxu0 0.0
        %781 = vmatpush2.msra.mxu0 0.0
        %782 = vmatprep.subr.mxu0 0.0
        %783 = vmatpush2.msra.mxu0 0.0
        %784 = vmatprep.subr.mxu0 0.0
        %785 = vmatpush2.msra.mxu0 0.0
        %786 = vmatprep.subr.mxu0 0.0
        %787 = vmatpush2.msra.mxu0 0.0
        %788 = vmatprep.subr.mxu0 0.0
        %789 = vmatpush2.msra.mxu0 0.0
        %790 = vmatprep.subr.mxu0 0.0
        %791 = vmatpush2.msra.mxu0 0.0
        %792 = vmatprep.subr.mxu0 0.0
        %793 = vmatpush2.msra.mxu0 0.0
        %794 = vmatprep.mubr.f32.mxu0 0.0
        %795 = vmatmul.mubr.f32.gmra.mxu0 %v728
        %v796 = vpop.f32.mrf.mxu0
        %v797 = vadd.f32 0.0, %v796
        %v798 = vpop.f32.mrf.mxu0
        %799 = vdwg.mxu0
        %v800 = vrsqrt.pop %v797
        %v801 = vmul.f32 %v800, 0.5
        %v802 = vmul.f32 %v725, %v801
        %v804 = vsel %vm422, %v567, 0
        %806 = vmatprep.subr.mxu0 0.0
        %807 = vmatpush1.msra.mxu0 0.0
        %808 = vmatprep.subr.mxu0 0.0
        %809 = vmatpush1.msra.mxu0 0.0
        %810 = vmatprep.subr.mxu0 0.0
        %811 = vmatpush1.msra.mxu0 0.0
        %812 = vmatprep.subr.mxu0 0.0
        %813 = vmatpush1.msra.mxu0 0.0
        %814 = vmatprep.subr.mxu0 0.0
        %815 = vmatpush1.msra.mxu0 0.0
        %816 = vmatprep.subr.mxu0 0.0
        %817 = vmatpush1.msra.mxu0 0.0
        %818 = vmatprep.subr.mxu0 0.0
        %819 = vmatpush1.msra.mxu0 0.0
        %820 = vmatprep.subr.mxu0 0.0
        %821 = vmatpush1.msra.mxu0 0.0
        %822 = vmatprep.subr.mxu0 0.0
        %823 = vmatpush1.msra.mxu0 0.0
        %824 = vmatprep.subr.mxu0 0.0
        %825 = vmatpush1.msra.mxu0 0.0
        %826 = vmatprep.subr.mxu0 0.0
        %827 = vmatpush1.msra.mxu0 0.0
        %828 = vmatprep.subr.mxu0 0.0
        %829 = vmatpush1.msra.mxu0 0.0
        %830 = vmatprep.subr.mxu0 0.0
        %831 = vmatpush1.msra.mxu0 %v647
        %832 = vmatprep.subr.mxu0 0.0
        %833 = vmatpush1.msra.mxu0 %v646
        %834 = vmatprep.subr.mxu0 0.0
        %835 = vmatpush1.msra.mxu0 %v645
        %836 = vmatprep.subr.mxu0 0.0
        %837 = vmatpush1.msra.mxu0 %v644
        %838 = vmatprep.subr.mxu0 0.0
        %839 = vmatpush2.msra.mxu0 0.0
        %840 = vmatprep.subr.mxu0 0.0
        %841 = vmatpush2.msra.mxu0 0.0
        %842 = vmatprep.subr.mxu0 0.0
        %843 = vmatpush2.msra.mxu0 0.0
        %844 = vmatprep.subr.mxu0 0.0
        %845 = vmatpush2.msra.mxu0 0.0
        %846 = vmatprep.subr.mxu0 0.0
        %847 = vmatpush2.msra.mxu0 0.0
        %848 = vmatprep.subr.mxu0 0.0
        %849 = vmatpush2.msra.mxu0 0.0
        %850 = vmatprep.subr.mxu0 0.0
        %851 = vmatpush2.msra.mxu0 0.0
        %852 = vmatprep.subr.mxu0 0.0
        %853 = vmatpush2.msra.mxu0 0.0
        %854 = vmatprep.subr.mxu0 0.0
        %855 = vmatpush2.msra.mxu0 0.0
        %856 = vmatprep.subr.mxu0 0.0
        %857 = vmatpush2.msra.mxu0 0.0
        %858 = vmatprep.subr.mxu0 0.0
        %859 = vmatpush2.msra.mxu0 0.0
        %860 = vmatprep.subr.mxu0 0.0
        %861 = vmatpush2.msra.mxu0 0.0
        %862 = vmatprep.subr.mxu0 0.0
        %863 = vmatpush2.msra.mxu0 0.0
        %864 = vmatprep.subr.mxu0 0.0
        %865 = vmatpush2.msra.mxu0 0.0
        %866 = vmatprep.subr.mxu0 0.0
        %867 = vmatpush2.msra.mxu0 0.0
        %868 = vmatprep.subr.mxu0 0.0
        %869 = vmatpush2.msra.mxu0 0.0
        %870 = vmatprep.mubr.f32.mxu0 0.0
        %871 = vmatmul.mubr.f32.gmra.mxu0 %v804
        %v872 = vpop.f32.mrf.mxu0
        %v873 = vadd.f32 0.0, %v872
        %v874 = vpop.f32.mrf.mxu0
        %875 = vdwg.mxu0
        %v876 = vsub.f32 %v567, %v873
        %v877 = vmul.f32 %v876, %v876
        %v879 = vsel %vm422, %v877, 0
        %881 = vmatprep.subr.mxu0 0.0
        %882 = vmatpush1.msra.mxu0 0.0
        %883 = vmatprep.subr.mxu0 0.0
        %884 = vmatpush1.msra.mxu0 0.0
        %885 = vmatprep.subr.mxu0 0.0
        %886 = vmatpush1.msra.mxu0 0.0
        %887 = vmatprep.subr.mxu0 0.0
        %888 = vmatpush1.msra.mxu0 0.0
        %889 = vmatprep.subr.mxu0 0.0
        %890 = vmatpush1.msra.mxu0 0.0
        %891 = vmatprep.subr.mxu0 0.0
        %892 = vmatpush1.msra.mxu0 0.0
        %893 = vmatprep.subr.mxu0 0.0
        %894 = vmatpush1.msra.mxu0 0.0
        %895 = vmatprep.subr.mxu0 0.0
        %896 = vmatpush1.msra.mxu0 0.0
        %897 = vmatprep.subr.mxu0 0.0
        %898 = vmatpush1.msra.mxu0 0.0
        %899 = vmatprep.subr.mxu0 0.0
        %900 = vmatpush1.msra.mxu0 0.0
        %901 = vmatprep.subr.mxu0 0.0
        %902 = vmatpush1.msra.mxu0 0.0
        %903 = vmatprep.subr.mxu0 0.0
        %904 = vmatpush1.msra.mxu0 0.0
        %905 = vmatprep.subr.mxu0 0.0
        %906 = vmatpush1.msra.mxu0 %v651
        %907 = vmatprep.subr.mxu0 0.0
        %908 = vmatpush1.msra.mxu0 %v650
        %909 = vmatprep.subr.mxu0 0.0
        %910 = vmatpush1.msra.mxu0 %v649
        %911 = vmatprep.subr.mxu0 0.0
        %912 = vmatpush1.msra.mxu0 %v648
        %913 = vmatprep.subr.mxu0 0.0
        %914 = vmatpush2.msra.mxu0 0.0
        %915 = vmatprep.subr.mxu0 0.0
        %916 = vmatpush2.msra.mxu0 0.0
        %917 = vmatprep.subr.mxu0 0.0
        %918 = vmatpush2.msra.mxu0 0.0
        %919 = vmatprep.subr.mxu0 0.0
        %920 = vmatpush2.msra.mxu0 0.0
        %921 = vmatprep.subr.mxu0 0.0
        %922 = vmatpush2.msra.mxu0 0.0
        %923 = vmatprep.subr.mxu0 0.0
        %924 = vmatpush2.msra.mxu0 0.0
        %925 = vmatprep.subr.mxu0 0.0
        %926 = vmatpush2.msra.mxu0 0.0
        %927 = vmatprep.subr.mxu0 0.0
        %928 = vmatpush2.msra.mxu0 0.0
        %929 = vmatprep.subr.mxu0 0.0
        %930 = vmatpush2.msra.mxu0 0.0
        %931 = vmatprep.subr.mxu0 0.0
        %932 = vmatpush2.msra.mxu0 0.0
        %933 = vmatprep.subr.mxu0 0.0
        %934 = vmatpush2.msra.mxu0 0.0
        %935 = vmatprep.subr.mxu0 0.0
        %936 = vmatpush2.msra.mxu0 0.0
        %937 = vmatprep.subr.mxu0 0.0
        %938 = vmatpush2.msra.mxu0 0.0
        %939 = vmatprep.subr.mxu0 0.0
        %940 = vmatpush2.msra.mxu0 0.0
        %941 = vmatprep.subr.mxu0 0.0
        %942 = vmatpush2.msra.mxu0 0.0
        %943 = vmatprep.subr.mxu0 0.0
        %944 = vmatpush2.msra.mxu0 0.0
        %945 = vmatprep.mubr.f32.mxu0 0.0
        %946 = vmatmul.mubr.f32.gmra.mxu0 %v879
        %v947 = vpop.f32.mrf.mxu0
        %v948 = vadd.f32 0.0, %v947
        %v949 = vpop.f32.mrf.mxu0
        %950 = vdwg.mxu0
        %v951 = vrsqrt.pop %v948
        %v952 = vmul.f32 %v876, %v951
        %v953 = vld [vmem:[%s8] sm:$0xff]
        %v954 = vld [vmem:[%s8 + $0x8] sm:$0xff]
        %v955 = vld [vmem:[%s8 + $0x10] sm:$0xff]
        %v956 = vld [vmem:[%s8 + $0x18] sm:$0xff]
        %v957 = vld [vmem:[%s8 + $0x20] sm:$0xff]
        %v958 = vld [vmem:[%s8 + $0x28] sm:$0xff]
        %v959 = vld [vmem:[%s8 + $0x30] sm:$0xff]
        %v960 = vld [vmem:[%s8 + $0x38] sm:$0xff]
        %v961 = vld [vmem:[%s9] sm:$0xff]
        %v962 = vld [vmem:[%s9 + $0x8] sm:$0xff]
        %v963 = vld [vmem:[%s9 + $0x10] sm:$0xff]
        %v964 = vld [vmem:[%s9 + $0x18] sm:$0xff]
        %v965 = vld [vmem:[%s9 + $0x20] sm:$0xff]
        %v966 = vld [vmem:[%s9 + $0x28] sm:$0xff]
        %v967 = vld [vmem:[%s9 + $0x30] sm:$0xff]
        %v968 = vld [vmem:[%s9 + $0x38] sm:$0xff]
        %v969 = vld [vmem:[%s10] sm:$0xff]
        %v970 = vmul.f32 %v952, %v953
        %v971 = vmul.f32 %v952, %v954
        %v972 = vmul.f32 %v952, %v955
        %v973 = vmul.f32 %v952, %v956
        %v974 = vmul.f32 %v952, %v957
        %v975 = vmul.f32 %v952, %v958
        %v976 = vmul.f32 %v952, %v959
        %v977 = vmul.f32 %v952, %v960
        %v978 = vmul.f32 %v641, %v953
        %v979 = vmul.f32 %v641, %v954
        %v980 = vmul.f32 %v641, %v955
        %v981 = vmul.f32 %v641, %v956
        %v982 = vmul.f32 %v641, %v957
        %v983 = vmul.f32 %v641, %v958
        %v984 = vmul.f32 %v641, %v959
        %v985 = vmul.f32 %v641, %v960
        %v987 = vsel %vm422, %v802, 0
        %v990 = vsel %vm422, %v970, 0
        %v993 = vsel %vm422, %v971, 0
        %v996 = vsel %vm422, %v972, 0
        %v999 = vsel %vm422, %v973, 0
        %v1002 = vsel %vm422, %v974, 0
        %v1005 = vsel %vm422, %v975, 0
        %v1008 = vsel %vm422, %v976, 0
        %v1011 = vsel %vm422, %v977, 0
        %1013 = vmatprep.subr.mxu0 0.0
        %1014 = vmatpush1.xpose.msra.mxu0 0.0
        %1015 = vmatprep.subr.mxu0 0.0
        %1016 = vmatpush1.xpose.msra.mxu0 0.0
        %1017 = vmatprep.subr.mxu0 0.0
        %1018 = vmatpush1.xpose.msra.mxu0 0.0
        %1019 = vmatprep.subr.mxu0 0.0
        %1020 = vmatpush1.xpose.msra.mxu0 0.0
        %1021 = vmatprep.subr.mxu0 0.0
        %1022 = vmatpush1.xpose.msra.mxu0 0.0
        %1023 = vmatprep.subr.mxu0 0.0
        %1024 = vmatpush1.xpose.msra.mxu0 0.0
        %1025 = vmatprep.subr.mxu0 0.0
        %1026 = vmatpush1.xpose.msra.mxu0 0.0
        %1027 = vmatprep.subr.mxu0 0.0
        %1028 = vmatpush1.xpose.msra.mxu0 0.0
        %1029 = vmatprep.subr.mxu0 0.0
        %1030 = vmatpush1.xpose.msra.mxu0 %v1011
        %1031 = vmatprep.subr.mxu0 0.0
        %1032 = vmatpush1.xpose.msra.mxu0 %v1008
        %1033 = vmatprep.subr.mxu0 0.0
        %1034 = vmatpush1.xpose.msra.mxu0 %v1005
        %1035 = vmatprep.subr.mxu0 0.0
        %1036 = vmatpush1.xpose.msra.mxu0 %v1002
        %1037 = vmatprep.subr.mxu0 0.0
        %1038 = vmatpush1.xpose.msra.mxu0 %v999
        %1039 = vmatprep.subr.mxu0 0.0
        %1040 = vmatpush1.xpose.msra.mxu0 %v996
        %1041 = vmatprep.subr.mxu0 0.0
        %1042 = vmatpush1.xpose.msra.mxu0 %v993
        %1043 = vmatprep.subr.mxu0 0.0
        %1044 = vmatpush1.xpose.msra.mxu0 %v990
        %1045 = vmatprep.subr.mxu0 0.0
        %1046 = vmatpush2.xpose.msra.mxu0 0.0
        %1047 = vmatprep.subr.mxu0 0.0
        %1048 = vmatpush2.xpose.msra.mxu0 0.0
        %1049 = vmatprep.subr.mxu0 0.0
        %1050 = vmatpush2.xpose.msra.mxu0 0.0
        %1051 = vmatprep.subr.mxu0 0.0
        %1052 = vmatpush2.xpose.msra.mxu0 0.0
        %1053 = vmatprep.subr.mxu0 0.0
        %1054 = vmatpush2.xpose.msra.mxu0 0.0
        %1055 = vmatprep.subr.mxu0 0.0
        %1056 = vmatpush2.xpose.msra.mxu0 0.0
        %1057 = vmatprep.subr.mxu0 0.0
        %1058 = vmatpush2.xpose.msra.mxu0 0.0
        %1059 = vmatprep.subr.mxu0 0.0
        %1060 = vmatpush2.xpose.msra.mxu0 0.0
        %1061 = vmatprep.subr.mxu0 0.0
        %1062 = vmatpush2.xpose.msra.mxu0 0.0
        %1063 = vmatprep.subr.mxu0 0.0
        %1064 = vmatpush2.xpose.msra.mxu0 0.0
        %1065 = vmatprep.subr.mxu0 0.0
        %1066 = vmatpush2.xpose.msra.mxu0 0.0
        %1067 = vmatprep.subr.mxu0 0.0
        %1068 = vmatpush2.xpose.msra.mxu0 0.0
        %1069 = vmatprep.subr.mxu0 0.0
        %1070 = vmatpush2.xpose.msra.mxu0 0.0
        %1071 = vmatprep.subr.mxu0 0.0
        %1072 = vmatpush2.xpose.msra.mxu0 0.0
        %1073 = vmatprep.subr.mxu0 0.0
        %1074 = vmatpush2.xpose.msra.mxu0 0.0
        %1075 = vmatprep.subr.mxu0 0.0
        %1076 = vmatpush2.xpose.msra.mxu0 0.0
        %1077 = vmatprep.mubr.f32.mxu0 0.0
        %1078 = vmatmul.mubr.f32.gmra.mxu0 %v987
        %v1079 = vpop.f32.mrf.mxu0
        %v1080 = vadd.f32 0.0, %v1079
        %v1081 = vpop.f32.mrf.mxu0
        %1082 = vdwg.mxu0
        %vm1083 = vcmask 523264
        %v1084 = vsel %vm1083, %v1080, -inf
        %1085 = vmax.xlane.f32.xlu0 %v1084
        %v1086 = vpop.xlane.xlu0 %1085
        %v1087 = vsub.f32 %v1080, %v1086
        %v1088 = vmul.f32 %v1087, 1.442695
        %v1089 = vpow.pop %v1088
        %v1091 = vsel %vm1083, %v1089, 0
        %1093 = vmatprep.subr.mxu0 0.0
        %1094 = vmatpush1.msra.mxu0 0.0
        %1095 = vmatprep.subr.mxu0 0.0
        %1096 = vmatpush1.msra.mxu0 0.0
        %1097 = vmatprep.subr.mxu0 0.0
        %1098 = vmatpush1.msra.mxu0 0.0
        %1099 = vmatprep.subr.mxu0 0.0
        %1100 = vmatpush1.msra.mxu0 0.0
        %1101 = vmatprep.subr.mxu0 0.0
        %1102 = vmatpush1.msra.mxu0 0.0
        %1103 = vmatprep.subr.mxu0 0.0
        %1104 = vmatpush1.msra.mxu0 0.0
        %1105 = vmatprep.subr.mxu0 0.0
        %1106 = vmatpush1.msra.mxu0 0.0
        %1107 = vmatprep.subr.mxu0 0.0
        %1108 = vmatpush1.msra.mxu0 0.0
        %1109 = vmatprep.subr.mxu0 0.0
        %1110 = vmatpush1.msra.mxu0 %v968
        %1111 = vmatprep.subr.mxu0 0.0
        %1112 = vmatpush1.msra.mxu0 %v967
        %1113 = vmatprep.subr.mxu0 0.0
        %1114 = vmatpush1.msra.mxu0 %v966
        %1115 = vmatprep.subr.mxu0 0.0
        %1116 = vmatpush1.msra.mxu0 %v965
        %1117 = vmatprep.subr.mxu0 0.0
        %1118 = vmatpush1.msra.mxu0 %v964
        %1119 = vmatprep.subr.mxu0 0.0
        %1120 = vmatpush1.msra.mxu0 %v963
        %1121 = vmatprep.subr.mxu0 0.0
        %1122 = vmatpush1.msra.mxu0 %v962
        %1123 = vmatprep.subr.mxu0 0.0
        %1124 = vmatpush1.msra.mxu0 %v961
        %1125 = vmatprep.subr.mxu0 0.0
        %1126 = vmatpush2.msra.mxu0 0.0
        %1127 = vmatprep.subr.mxu0 0.0
        %1128 = vmatpush2.msra.mxu0 0.0
        %1129 = vmatprep.subr.mxu0 0.0
        %1130 = vmatpush2.msra.mxu0 0.0
        %1131 = vmatprep.subr.mxu0 0.0
        %1132 = vmatpush2.msra.mxu0 0.0
        %1133 = vmatprep.subr.mxu0 0.0
        %1134 = vmatpush2.msra.mxu0 0.0
        %1135 = vmatprep.subr.mxu0 0.0
        %1136 = vmatpush2.msra.mxu0 0.0
        %1137 = vmatprep.subr.mxu0 0.0
        %1138 = vmatpush2.msra.mxu0 0.0
        %1139 = vmatprep.subr.mxu0 0.0
        %1140 = vmatpush2.msra.mxu0 0.0
        %1141 = vmatprep.subr.mxu0 0.0
        %1142 = vmatpush2.msra.mxu0 0.0
        %1143 = vmatprep.subr.mxu0 0.0
        %1144 = vmatpush2.msra.mxu0 0.0
        %1145 = vmatprep.subr.mxu0 0.0
        %1146 = vmatpush2.msra.mxu0 0.0
        %1147 = vmatprep.subr.mxu0 0.0
        %1148 = vmatpush2.msra.mxu0 0.0
        %1149 = vmatprep.subr.mxu0 0.0
        %1150 = vmatpush2.msra.mxu0 0.0
        %1151 = vmatprep.subr.mxu0 0.0
        %1152 = vmatpush2.msra.mxu0 0.0
        %1153 = vmatprep.subr.mxu0 0.0
        %1154 = vmatpush2.msra.mxu0 0.0
        %1155 = vmatprep.subr.mxu0 0.0
        %1156 = vmatpush2.msra.mxu0 0.0
        %1157 = vmatprep.mubr.f32.mxu0 0.0
        %1158 = vmatmul.mubr.f32.gmra.mxu0 %v1091
        %v1159 = vpop.f32.mrf.mxu0
        %v1160 = vadd.f32 0.0, %v1159
        %v1161 = vpop.f32.mrf.mxu0
        %1162 = vdwg.mxu0
        %v1163 = vrcp.pop %v1160
        %v1164 = vmul.f32 %v1160, %v1163
        %v1165 = vsub.f32 2.0, %v1164
        %v1166 = vmul.f32 %v1163, %v1165
        %1167 = vmatprep.subr.mxu0 0.0
        %1168 = vmatpush1.msra.mxu0 0.0
        %1169 = vmatprep.subr.mxu0 0.0
        %1170 = vmatpush1.msra.mxu0 0.0
        %1171 = vmatprep.subr.mxu0 0.0
        %1172 = vmatpush1.msra.mxu0 0.0
        %1173 = vmatprep.subr.mxu0 0.0
        %1174 = vmatpush1.msra.mxu0 0.0
        %1175 = vmatprep.subr.mxu0 0.0
        %1176 = vmatpush1.msra.mxu0 0.0
        %1177 = vmatprep.subr.mxu0 0.0
        %1178 = vmatpush1.msra.mxu0 0.0
        %1179 = vmatprep.subr.mxu0 0.0
        %1180 = vmatpush1.msra.mxu0 0.0
        %1181 = vmatprep.subr.mxu0 0.0
        %1182 = vmatpush1.msra.mxu0 0.0
        %1183 = vmatprep.subr.mxu0 0.0
        %1184 = vmatpush1.msra.mxu0 %v985
        %1185 = vmatprep.subr.mxu0 0.0
        %1186 = vmatpush1.msra.mxu0 %v984
        %1187 = vmatprep.subr.mxu0 0.0
        %1188 = vmatpush1.msra.mxu0 %v983
        %1189 = vmatprep.subr.mxu0 0.0
        %1190 = vmatpush1.msra.mxu0 %v982
        %1191 = vmatprep.subr.mxu0 0.0
        %1192 = vmatpush1.msra.mxu0 %v981
        %1193 = vmatprep.subr.mxu0 0.0
        %1194 = vmatpush1.msra.mxu0 %v980
        %1195 = vmatprep.subr.mxu0 0.0
        %1196 = vmatpush1.msra.mxu0 %v979
        %1197 = vmatprep.subr.mxu0 0.0
        %1198 = vmatpush1.msra.mxu0 %v978
        %1199 = vmatprep.subr.mxu0 0.0
        %1200 = vmatpush2.msra.mxu0 0.0
        %1201 = vmatprep.subr.mxu0 0.0
        %1202 = vmatpush2.msra.mxu0 0.0
        %1203 = vmatprep.subr.mxu0 0.0
        %1204 = vmatpush2.msra.mxu0 0.0
        %1205 = vmatprep.subr.mxu0 0.0
        %1206 = vmatpush2.msra.mxu0 0.0
        %1207 = vmatprep.subr.mxu0 0.0
        %1208 = vmatpush2.msra.mxu0 0.0
        %1209 = vmatprep.subr.mxu0 0.0
        %1210 = vmatpush2.msra.mxu0 0.0
        %1211 = vmatprep.subr.mxu0 0.0
        %1212 = vmatpush2.msra.mxu0 0.0
        %1213 = vmatprep.subr.mxu0 0.0
        %1214 = vmatpush2.msra.mxu0 0.0
        %1215 = vmatprep.subr.mxu0 0.0
        %1216 = vmatpush2.msra.mxu0 0.0
        %1217 = vmatprep.subr.mxu0 0.0
        %1218 = vmatpush2.msra.mxu0 0.0
        %1219 = vmatprep.subr.mxu0 0.0
        %1220 = vmatpush2.msra.mxu0 0.0
        %1221 = vmatprep.subr.mxu0 0.0
        %1222 = vmatpush2.msra.mxu0 0.0
        %1223 = vmatprep.subr.mxu0 0.0
        %1224 = vmatpush2.msra.mxu0 0.0
        %1225 = vmatprep.subr.mxu0 0.0
        %1226 = vmatpush2.msra.mxu0 0.0
        %1227 = vmatprep.subr.mxu0 0.0
        %1228 = vmatpush2.msra.mxu0 0.0
        %1229 = vmatprep.subr.mxu0 0.0
        %1230 = vmatpush2.msra.mxu0 0.0
        %1231 = vmatprep.mubr.f32.mxu0 0.0
        %1232 = vmatmul.mubr.f32.gmra.mxu0 %v1091
        %v1233 = vpop.f32.mrf.mxu0
        %v1234 = vadd.f32 0.0, %v1233
        %v1235 = vpop.f32.mrf.mxu0
        %1236 = vdwg.mxu0
        %vm1237 = vcmask 64512
        %v1239 = vsel %vm1237, %v1166, 0
        %1241 = vmatprep.subr.mxu0 0.0
        %1242 = vmatpush1.msra.mxu0 0.0
        %1243 = vmatprep.subr.mxu0 0.0
        %1244 = vmatpush1.msra.mxu0 0.0
        %1245 = vmatprep.subr.mxu0 0.0
        %1246 = vmatpush1.msra.mxu0 0.0
        %1247 = vmatprep.subr.mxu0 0.0
        %1248 = vmatpush1.msra.mxu0 0.0
        %1249 = vmatprep.subr.mxu0 0.0
        %1250 = vmatpush1.msra.mxu0 0.0
        %1251 = vmatprep.subr.mxu0 0.0
        %1252 = vmatpush1.msra.mxu0 0.0
        %1253 = vmatprep.subr.mxu0 0.0
        %1254 = vmatpush1.msra.mxu0 0.0
        %1255 = vmatprep.subr.mxu0 0.0
        %1256 = vmatpush1.msra.mxu0 0.0
        %1257 = vmatprep.subr.mxu0 0.0
        %1258 = vmatpush1.msra.mxu0 0.0
        %1259 = vmatprep.subr.mxu0 0.0
        %1260 = vmatpush1.msra.mxu0 0.0
        %1261 = vmatprep.subr.mxu0 0.0
        %1262 = vmatpush1.msra.mxu0 0.0
        %1263 = vmatprep.subr.mxu0 0.0
        %1264 = vmatpush1.msra.mxu0 0.0
        %1265 = vmatprep.subr.mxu0 0.0
        %1266 = vmatpush1.msra.mxu0 0.0
        %1267 = vmatprep.subr.mxu0 0.0
        %1268 = vmatpush1.msra.mxu0 0.0
        %1269 = vmatprep.subr.mxu0 0.0
        %1270 = vmatpush1.msra.mxu0 0.0
        %1271 = vmatprep.subr.mxu0 0.0
        %1272 = vmatpush1.msra.mxu0 %v969
        %1273 = vmatprep.subr.mxu0 0.0
        %1274 = vmatpush2.msra.mxu0 0.0
        %1275 = vmatprep.subr.mxu0 0.0
        %1276 = vmatpush2.msra.mxu0 0.0
        %1277 = vmatprep.subr.mxu0 0.0
        %1278 = vmatpush2.msra.mxu0 0.0
        %1279 = vmatprep.subr.mxu0 0.0
        %1280 = vmatpush2.msra.mxu0 0.0
        %1281 = vmatprep.subr.mxu0 0.0
        %1282 = vmatpush2.msra.mxu0 0.0
        %1283 = vmatprep.subr.mxu0 0.0
        %1284 = vmatpush2.msra.mxu0 0.0
        %1285 = vmatprep.subr.mxu0 0.0
        %1286 = vmatpush2.msra.mxu0 0.0
        %1287 = vmatprep.subr.mxu0 0.0
        %1288 = vmatpush2.msra.mxu0 0.0
        %1289 = vmatprep.subr.mxu0 0.0
        %1290 = vmatpush2.msra.mxu0 0.0
        %1291 = vmatprep.subr.mxu0 0.0
        %1292 = vmatpush2.msra.mxu0 0.0
        %1293 = vmatprep.subr.mxu0 0.0
        %1294 = vmatpush2.msra.mxu0 0.0
        %1295 = vmatprep.subr.mxu0 0.0
        %1296 = vmatpush2.msra.mxu0 0.0
        %1297 = vmatprep.subr.mxu0 0.0
        %1298 = vmatpush2.msra.mxu0 0.0
        %1299 = vmatprep.subr.mxu0 0.0
        %1300 = vmatpush2.msra.mxu0 0.0
        %1301 = vmatprep.subr.mxu0 0.0
        %1302 = vmatpush2.msra.mxu0 0.0
        %1303 = vmatprep.subr.mxu0 0.0
        %1304 = vmatpush2.msra.mxu0 0.0
        %1305 = vmatprep.mubr.f32.mxu0 0.0
        %1306 = vmatmul.mubr.f32.gmra.mxu0 %v1239
        %v1307 = vpop.f32.mrf.mxu0
        %v1308 = vadd.f32 0.0, %v1307
        %v1309 = vpop.f32.mrf.mxu0
        %1310 = vdwg.mxu0
        %v1311 = vmul.f32 %v1234, %v1308
        %v1312 = vld [vmem:[%s4] sm:$0xff]
        %v1313 = vld [vmem:[%s4 + $0x8] sm:$0xff]
        %v1314 = vld [vmem:[%s4 + $0x10] sm:$0xff]
        %v1315 = vld [vmem:[%s4 + $0x18] sm:$0xff]
        %v1316 = vld [vmem:[%s5] sm:$0x1]
        %v1318 = vlaneseq
        %v1319 = vshrl.u32 %v1318, 7
        %v1320 = vsub.s32 0, %v1319
        %v1321 = vrot.slane %v1316, %v1320
        %v1324 = vsel %vm422, %v1311, 0
        %1326 = vmatprep.subr.mxu0 0.0
        %1327 = vmatpush1.msra.mxu0 0.0
        %1328 = vmatprep.subr.mxu0 0.0
        %1329 = vmatpush1.msra.mxu0 0.0
        %1330 = vmatprep.subr.mxu0 0.0
        %1331 = vmatpush1.msra.mxu0 0.0
        %1332 = vmatprep.subr.mxu0 0.0
        %1333 = vmatpush1.msra.mxu0 0.0
        %1334 = vmatprep.subr.mxu0 0.0
        %1335 = vmatpush1.msra.mxu0 0.0
        %1336 = vmatprep.subr.mxu0 0.0
        %1337 = vmatpush1.msra.mxu0 0.0
        %1338 = vmatprep.subr.mxu0 0.0
        %1339 = vmatpush1.msra.mxu0 0.0
        %1340 = vmatprep.subr.mxu0 0.0
        %1341 = vmatpush1.msra.mxu0 0.0
        %1342 = vmatprep.subr.mxu0 0.0
        %1343 = vmatpush1.msra.mxu0 0.0
        %1344 = vmatprep.subr.mxu0 0.0
        %1345 = vmatpush1.msra.mxu0 0.0
        %1346 = vmatprep.subr.mxu0 0.0
        %1347 = vmatpush1.msra.mxu0 0.0
        %1348 = vmatprep.subr.mxu0 0.0
        %1349 = vmatpush1.msra.mxu0 0.0
        %1350 = vmatprep.subr.mxu0 0.0
        %1351 = vmatpush1.msra.mxu0 %v1315
        %1352 = vmatprep.subr.mxu0 0.0
        %1353 = vmatpush1.msra.mxu0 %v1314
        %1354 = vmatprep.subr.mxu0 0.0
        %1355 = vmatpush1.msra.mxu0 %v1313
        %1356 = vmatprep.subr.mxu0 0.0
        %1357 = vmatpush1.msra.mxu0 %v1312
        %1358 = vmatprep.subr.mxu0 0.0
        %1359 = vmatpush2.msra.mxu0 0.0
        %1360 = vmatprep.subr.mxu0 0.0
        %1361 = vmatpush2.msra.mxu0 0.0
        %1362 = vmatprep.subr.mxu0 0.0
        %1363 = vmatpush2.msra.mxu0 0.0
        %1364 = vmatprep.subr.mxu0 0.0
        %1365 = vmatpush2.msra.mxu0 0.0
        %1366 = vmatprep.subr.mxu0 0.0
        %1367 = vmatpush2.msra.mxu0 0.0
        %1368 = vmatprep.subr.mxu0 0.0
        %1369 = vmatpush2.msra.mxu0 0.0
        %1370 = vmatprep.subr.mxu0 0.0
        %1371 = vmatpush2.msra.mxu0 0.0
        %1372 = vmatprep.subr.mxu0 0.0
        %1373 = vmatpush2.msra.mxu0 0.0
        %1374 = vmatprep.subr.mxu0 0.0
        %1375 = vmatpush2.msra.mxu0 0.0
        %1376 = vmatprep.subr.mxu0 0.0
        %1377 = vmatpush2.msra.mxu0 0.0
        %1378 = vmatprep.subr.mxu0 0.0
        %1379 = vmatpush2.msra.mxu0 0.0
        %1380 = vmatprep.subr.mxu0 0.0
        %1381 = vmatpush2.msra.mxu0 0.0
        %1382 = vmatprep.subr.mxu0 0.0
        %1383 = vmatpush2.msra.mxu0 0.0
        %1384 = vmatprep.subr.mxu0 0.0
        %1385 = vmatpush2.msra.mxu0 0.0
        %1386 = vmatprep.subr.mxu0 0.0
        %1387 = vmatpush2.msra.mxu0 0.0
        %1388 = vmatprep.subr.mxu0 0.0
        %1389 = vmatpush2.msra.mxu0 0.0
        %1390 = vmatprep.mubr.f32.mxu0 0.0
        %1391 = vmatmul.mubr.f32.gmra.mxu0 %v1324
        %v1392 = vpop.f32.mrf.mxu0
        %v1393 = vadd.f32 %v1321, %v1392
        %v1394 = vpop.f32.mrf.mxu0
        %1395 = vdwg.mxu0
        %1396 = vst.msk [vmem:[%s416] sm:$0xff] %vm422, %v1393
        %s1397 = sand.u32 %s273, 1
        %s1398 = scalar_lea.sflag [#allocation4], %s1397
        %s1399 = sand.u32 %s273, 1
        %s1400 = smul.addr %s1399, 8
        %s1401 = scalar_lea.vmem [#allocation7], %s1400
        // Predicated region
        $region73: #{tpu_custom_call.1} parent=63 // pred_check
          %p1402 = pneg %p283
        $region74: #{tpu_custom_call.1} parent=63 // pred_check_branch
          %1404 = sbr.rel (%p1402) target = $region76
        $region75: #{tpu_custom_call.1} parent=63 // pred_region
          %s1406 = ssub.s32 128, 128
          %1407 = vsyncadd %s1398, %s1406
          %s1408 = smul.addr %s29, 128
          %s1409 = scalar_lea.hbm %s11, %s1408
          %s1411 = sshll.u32 %s1401, 4
          %s1412 = int_to_ptr.vmem [resolvable:$true] %s1411
          %1414 = dma.vmem_to_hbm [thread:$0]  %s1412, 128, %s1409, %s1398
        $region76: #{tpu_custom_call.1} parent=63 // pred_fallthru
          _
      $region64: #{tpu_custom_call.1} parent=5 // pred_fallthru
        _
      %p1415 = scmp.le.s32.totalorder 2, %s24
      // Predicated region
      $region77: #{tpu_custom_call.1} parent=5 // pred_check
        %p1416 = pneg %p1415
      $region78: #{tpu_custom_call.1} parent=5 // pred_check_branch
        %1418 = sbr.rel (%p1416) target = $region80
      $region79: #{tpu_custom_call.1} parent=5 // pred_region
        %s1419 = ssub.s32 %s24, 2
        // Predicated region
        $region81: #{tpu_custom_call.1} parent=79 // pred_check
          %p1420 = pneg %p289
        $region82: #{tpu_custom_call.1} parent=79 // pred_check_branch
          %1422 = sbr.rel (%p1420) target = $region84
        $region83: #{tpu_custom_call.1} parent=79 // pred_region
          %s1423 = sand.u32 %s274, 1
          %s1424 = scalar_lea.sflag [#allocation4], %s1423
          %s1425 = sand.u32 %s274, 1
          %s1426 = smul.addr %s1425, 8
          %s1427 = scalar_lea.vmem [#allocation7], %s1426
          %1428 = dma.done %s1424, 128
        $region84: #{tpu_custom_call.1} parent=79 // pred_fallthru
          _
      $region80: #{tpu_custom_call.1} parent=5 // pred_fallthru
        _
    $region6: #{tpu_custom_call.1} parent=1 // loop_footer
      %s28 = sadd.s32 1, %s24
    $region7: #{tpu_custom_call.1} parent=1 // loop_footer_branch
      %23 = sbr.rel target = $region3
    $region8: #{tpu_custom_call.1} parent=1 // loop_exit
      _
    %1429 = vsyncpa [#allocation3], 1
    %s1430 = scalar_lea.sflag [#allocation3], 1
    %1431 = vsyncpa %s1430, 1
    %1432 = vsyncpa [#allocation6], 1
    %1433 = vsyncpa [#allocation4], 1
    %s1434 = scalar_lea.sflag [#allocation4], 1
    %1435 = vsyncpa %s1434, 1

</llo_original>
